<compile_context>
chip_gen: v5e
topology: v5e:2x2
jax: 0.10.0
libtpu: 0.0.40
codegen_flags: <defaults>
</compile_context>

<pallas_src>
import functools

import jax
import jax.numpy as jnp
from jax import lax
from jax.experimental import pallas as pl
from jax.experimental.pallas import tpu as pltpu


def self_attention_kernel(
    x_ref, wqkv_ref, bqkv_ref, wo_ref, bo_ref, o_ref, hcat_ref,
    *, num_heads: int, head_dim: int,
):
    """One grid step handles one batch element end-to-end.

    x_ref    : (1, S, E)  f32   input tokens for this batch element
    wqkv_ref : (E, 3E)    bf16  fused, pre-transposed QKV weights (in, out);
                                 Q columns already scaled by 1/sqrt(head_dim)
    bqkv_ref : (1, 3E)    f32   fused QKV bias (Q part pre-scaled)
    wo_ref   : (E, E)     bf16  pre-transposed out_proj weight (in, out)
    bo_ref   : (1, E)     f32   out_proj bias
    o_ref    : (1, S, E)  f32   output tokens
    hcat_ref : (S, E)     bf16  VMEM scratch holding concatenated head outputs
    """
    E = num_heads * head_dim

    # Single cast point: x -> bf16 for the MXU.
    x = x_ref[0].astype(jnp.bfloat16)                                    # (S, E)

    # --- fused QKV projection: one wide matmul, f32 accumulation ---
    # (the 1/sqrt(D) scale is pre-folded into the Q slab of wqkv/bqkv)
    qkv_f32 = jnp.dot(x, wqkv_ref[...], preferred_element_type=jnp.float32)
    qkv = (qkv_f32 + bqkv_ref[...]).astype(jnp.bfloat16)                 # (S, 3E) bf16

    # Static loop over heads (num_heads small & known at trace time).
    for h in range(num_heads):
        lo = h * head_dim
        qh = qkv[:, lo:lo + head_dim]                                    # (S, D) bf16
        kh = qkv[:, E + lo:E + lo + head_dim]                            # (S, D) bf16
        vh = qkv[:, 2 * E + lo:2 * E + lo + head_dim]                    # (S, D) bf16

        # scores: qh @ kh.T without materializing a transpose (scale folded)
        s = lax.dot_general(
            qh, kh, (((1,), (1,)), ((), ())),
            preferred_element_type=jnp.float32,
        )                                                                # (S, S) f32

        # numerically-stable softmax, normalization deferred to the head output
        s = s - jnp.max(s, axis=-1, keepdims=True)
        p = jnp.exp(s)                                                   # unnormalized
        row_sum = jnp.sum(p, axis=-1, keepdims=True)                     # (S, 1) f32

        head_out = jnp.dot(
            p.astype(jnp.bfloat16), vh, preferred_element_type=jnp.float32
        )                                                                # (S, D) f32
        head_out = head_out * pl.reciprocal(row_sum, approx=True)        # (S, D)

        # stash this head's output at its column slice of the concat scratch
        hcat_ref[:, lo:lo + head_dim] = head_out.astype(jnp.bfloat16)

    # --- single fused out-projection: K = E matmul, bias added in f32 ---
    out = jnp.dot(
        hcat_ref[...], wo_ref[...], preferred_element_type=jnp.float32
    ) + bo_ref[...]                                                      # (S, E) f32
    o_ref[0] = out.astype(o_ref.dtype)


def pack_params(params, *, num_heads: int):
    """Host-side, one-time weight prep (keep OUT of the per-call path):
    pre-transpose to (in, out), fuse QKV, fold the 1/sqrt(D) scale into the Q
    slab in f32, then cast weights to bf16."""
    E = params["wq"].shape[0]
    head_dim = E // num_heads
    scale = jnp.float32(head_dim ** -0.5)

    wq_scaled = params["wq"].astype(jnp.float32) * scale                 # fold in f32
    bq_scaled = params["bq"].astype(jnp.float32) * scale

    wqkv = jnp.concatenate(
        [wq_scaled.T, params["wk"].T, params["wv"].T], axis=1
    ).astype(jnp.bfloat16)                                               # (E, 3E)
    bqkv = jnp.concatenate(
        [bq_scaled, params["bk"], params["bv"]], axis=1
    ).astype(jnp.float32)                                                # (1, 3E)
    wo_t = params["wo"].T.astype(jnp.bfloat16)                           # (E, E)
    bo = params["bo"].astype(jnp.float32)                                # (1, E)
    return {"wqkv": wqkv, "bqkv": bqkv, "wo_t": wo_t, "bo": bo}


@functools.partial(jax.jit, static_argnames=("num_heads",))
def self_attention(x, packed, *, num_heads: int):
    """x: (B, S, E) float32.  packed: output of pack_params()."""
    B, S, E = x.shape
    assert E % num_heads == 0
    head_dim = E // num_heads

    wqkv, bqkv, wo_t, bo = packed["wqkv"], packed["bqkv"], packed["wo_t"], packed["bo"]

    kernel = functools.partial(
        self_attention_kernel, num_heads=num_heads, head_dim=head_dim
    )

    # Advisory cost estimate for XLA scheduling around the custom call.
    flops = 8 * B * S * E * E + 4 * B * S * S * E
    transcendentals = B * num_heads * S * S
    bytes_accessed = (
        x.size * 4 + B * S * E * 4          # x in, out
        + wqkv.size * 2 + wo_t.size * 2     # bf16 weights
        + bqkv.size * 4 + bo.size * 4       # f32 biases
    )

    return pl.pallas_call(
        kernel,
        out_shape=jax.ShapeDtypeStruct((B, S, E), x.dtype),
        grid_spec=pltpu.PrefetchScalarGridSpec(
            num_scalar_prefetch=0,
            grid=(B,),
            in_specs=[
                pl.BlockSpec((1, S, E), lambda b: (b, 0, 0)),    # x
                pl.BlockSpec((E, 3 * E), lambda b: (0, 0)),      # fused QKV weight
                pl.BlockSpec((1, 3 * E), lambda b: (0, 0)),      # fused QKV bias
                pl.BlockSpec((E, E), lambda b: (0, 0)),          # out_proj weight (T)
                pl.BlockSpec((1, E), lambda b: (0, 0)),          # out_proj bias
            ],
            out_specs=pl.BlockSpec((1, S, E), lambda b: (b, 0, 0)),
            scratch_shapes=[pltpu.VMEM((S, E), jnp.bfloat16)],   # head-concat scratch
        ),
        compiler_params=pltpu.CompilerParams(
            dimension_semantics=("parallel",),
        ),
        cost_estimate=pl.CostEstimate(
            flops=flops,
            transcendentals=transcendentals,
            bytes_accessed=bytes_accessed,
        ),
    )(x, wqkv, bqkv, wo_t, bo)


def reference_self_attention(x, params, *, num_heads: int):
    """Pure-JAX f32 reference mirroring the PyTorch forward exactly."""
    B, S, E = x.shape
    D = E // num_heads

    def linear(x, w, b):
        return jnp.einsum("bse,oe->bso", x, w) + b

    q = linear(x, params["wq"], params["bq"]).reshape(B, S, num_heads, D).transpose(0, 2, 1, 3)
    k = linear(x, params["wk"], params["bk"]).reshape(B, S, num_heads, D).transpose(0, 2, 1, 3)
    v = linear(x, params["wv"], params["bv"]).reshape(B, S, num_heads, D).transpose(0, 2, 1, 3)

    attn = jnp.einsum("bhqd,bhkd->bhqk", q, k) * D ** (-0.5)
    attn = jax.nn.softmax(attn, axis=-1)
    out = jnp.einsum("bhqk,bhkd->bhqd", attn, v)
    out = out.transpose(0, 2, 1, 3).reshape(B, S, E)
    return linear(out, params["wo"], params["bo"])


def init_params(key, embed_dim):
    """Deterministic nn.Linear-style init: U(-1/sqrt(in), 1/sqrt(in))."""
    bound = 1.0 / (embed_dim ** 0.5)
    keys = jax.random.split(key, 8)

    def u(k, shape):
        return jax.random.uniform(k, shape, jnp.float32, -bound, bound)

    return {
        "wq": u(keys[0], (embed_dim, embed_dim)), "bq": u(keys[1], (1, embed_dim)),
        "wk": u(keys[2], (embed_dim, embed_dim)), "bk": u(keys[3], (1, embed_dim)),
        "wv": u(keys[4], (embed_dim, embed_dim)), "bv": u(keys[5], (1, embed_dim)),
        "wo": u(keys[6], (embed_dim, embed_dim)), "bo": u(keys[7], (1, embed_dim)),
    }


if __name__ == "__main__":
    # Small, TPU-tile-friendly shapes consistent with the module's forward:
    # batch=2, seq_len=128, embedding_dimension=128, num_attention_heads=4.
    B, S, E, H = 2, 128, 128, 4

    key = jax.random.PRNGKey(0)
    kx, kp = jax.random.split(key)
    x = jax.random.normal(kx, (B, S, E), jnp.float32)
    params = init_params(kp, E)

    # One-time weight packing (kept out of the per-call path).
    packed = jax.tree_util.tree_map(jax.block_until_ready, pack_params(params, num_heads=H))

    out = self_attention(x, packed, num_heads=H)
    out = jax.block_until_ready(out)

    ref = reference_self_attention(x, params, num_heads=H)
    assert out.shape == (B, S, E)
    # Tolerance reflects bf16 matmul operands (f32 accumulation) + approx recip.
    assert jnp.allclose(out, ref, atol=3e-2, rtol=3e-2), "mismatch vs reference"

    print("KERNEL_OK")
</pallas_src>

<mosaic_0001>
module attributes {stable_mosaic.version = 11 : i64} {
  func.func @self_attention_kernel(%arg0: i32, %arg1: memref<1x128x128xf32, #tpu.memory_space<vmem>>, %arg2: memref<128x384xbf16, #tpu.memory_space<vmem>>, %arg3: memref<1x384xf32, #tpu.memory_space<vmem>>, %arg4: memref<128x128xbf16, #tpu.memory_space<vmem>>, %arg5: memref<1x128xf32, #tpu.memory_space<vmem>>, %arg6: memref<1x128x128xf32, #tpu.memory_space<vmem>>, %arg7: memref<128x128xbf16, #tpu.memory_space<vmem>>) attributes {dimension_semantics = [#tpu.dimension_semantics<parallel>], iteration_bounds = array<i64: 2>, scalar_prefetch = 0 : i64, scratch_operands = 1 : i64, tpu.core_type = #tpu.core_type<tc>, window_params = [{transform_indices = @transform_0, window_bounds = array<i64: 1, 128, 128>}, {pipeline_mode = #tpu.pipeline_mode<synchronous>, transform_indices = @transform_1, window_bounds = array<i64: 128, 384>}, {pipeline_mode = #tpu.pipeline_mode<synchronous>, transform_indices = @transform_2, window_bounds = array<i64: 1, 384>}, {pipeline_mode = #tpu.pipeline_mode<synchronous>, transform_indices = @transform_3, window_bounds = array<i64: 128, 128>}, {pipeline_mode = #tpu.pipeline_mode<synchronous>, transform_indices = @transform_4, window_bounds = array<i64: 1, 128>}, {transform_indices = @transform_5, window_bounds = array<i64: 1, 128, 128>}]} {
    %c0 = arith.constant 0 : index
    %c0_0 = arith.constant 0 : index
    %c0_1 = arith.constant 0 : index
    %0 = vector.load %arg1[%c0, %c0_0, %c0_1] : memref<1x128x128xf32, #tpu.memory_space<vmem>>, vector<1x128x128xf32>
    %1 = vector.shape_cast %0 : vector<1x128x128xf32> to vector<128x128xf32>
    %2 = arith.truncf %1 : vector<128x128xf32> to vector<128x128xbf16>
    %c0_2 = arith.constant 0 : index
    %c0_3 = arith.constant 0 : index
    %3 = vector.load %arg2[%c0_2, %c0_3] : memref<128x384xbf16, #tpu.memory_space<vmem>>, vector<128x384xbf16>
    %cst = arith.constant dense<0.000000e+00> : vector<128x384xf32>
    %4 = tpu.matmul %2, %3, %cst {dimension_numbers = #tpu.dot_dimension_numbers<[1], [0], [0], [1], [0, 0, 1, 1], [], []>} : vector<128x128xbf16>, vector<128x384xbf16>, vector<128x384xf32> -> vector<128x384xf32>
    %c0_4 = arith.constant 0 : index
    %c0_5 = arith.constant 0 : index
    %5 = vector.load %arg3[%c0_4, %c0_5] : memref<1x384xf32, #tpu.memory_space<vmem>>, vector<1x384xf32>
    %6 = vector.broadcast %5 : vector<1x384xf32> to vector<128x384xf32>
    %7 = arith.addf %4, %6 : vector<128x384xf32>
    %8 = arith.truncf %7 : vector<128x384xf32> to vector<128x384xbf16>
    %9 = vector.extract_strided_slice %8 {offsets = [0, 0], sizes = [128, 32], strides = [1, 1]} : vector<128x384xbf16> to vector<128x32xbf16>
    %10 = vector.extract_strided_slice %8 {offsets = [0, 128], sizes = [128, 32], strides = [1, 1]} : vector<128x384xbf16> to vector<128x32xbf16>
    %11 = vector.extract_strided_slice %8 {offsets = [0, 256], sizes = [128, 32], strides = [1, 1]} : vector<128x384xbf16> to vector<128x32xbf16>
    %cst_6 = arith.constant dense<0.000000e+00> : vector<128x128xf32>
    %12 = tpu.matmul %9, %10, %cst_6 {dimension_numbers = #tpu.dot_dimension_numbers<[1], [1], [0], [0], [0, 0, 1, 0], [], []>} : vector<128x32xbf16>, vector<128x32xbf16>, vector<128x128xf32> -> vector<128x128xf32>
    %cst_7 = arith.constant dense<0xFF800000> : vector<128xf32>
    %13 = vector.multi_reduction <maximumf>, %12, %cst_7 [1] : vector<128x128xf32> to vector<128xf32>
    %14 = vector.shape_cast %13 : vector<128xf32> to vector<128x1xf32>
    %15 = vector.broadcast %14 : vector<128x1xf32> to vector<128x128xf32>
    %16 = arith.subf %12, %15 : vector<128x128xf32>
    %17 = math.exp %16 : vector<128x128xf32>
    %cst_8 = arith.constant dense<0.000000e+00> : vector<128xf32>
    %18 = vector.multi_reduction <add>, %17, %cst_8 [1] : vector<128x128xf32> to vector<128xf32>
    %19 = vector.shape_cast %18 : vector<128xf32> to vector<128x1xf32>
    %20 = arith.truncf %17 : vector<128x128xf32> to vector<128x128xbf16>
    %cst_9 = arith.constant dense<0.000000e+00> : vector<128x32xf32>
    %21 = tpu.matmul %20, %11, %cst_9 {dimension_numbers = #tpu.dot_dimension_numbers<[1], [0], [0], [1], [0, 0, 1, 1], [], []>} : vector<128x128xbf16>, vector<128x32xbf16>, vector<128x32xf32> -> vector<128x32xf32>
    %22 = tpu.reciprocal %19 {approx = true} : vector<128x1xf32> -> vector<128x1xf32>
    %23 = vector.broadcast %22 : vector<128x1xf32> to vector<128x32xf32>
    %24 = arith.mulf %21, %23 : vector<128x32xf32>
    %25 = arith.truncf %24 : vector<128x32xf32> to vector<128x32xbf16>
    %c0_10 = arith.constant 0 : index
    %c0_11 = arith.constant 0 : index
    %26 = vector.load %arg7[%c0_10, %c0_11] : memref<128x128xbf16, #tpu.memory_space<vmem>>, vector<128x32xbf16>
    tpu.vector_store %arg7[%c0_10, %c0_11], %25 {strides = array<i32>} : memref<128x128xbf16, #tpu.memory_space<vmem>>, vector<128x32xbf16>,
    %27 = vector.extract_strided_slice %8 {offsets = [0, 32], sizes = [128, 32], strides = [1, 1]} : vector<128x384xbf16> to vector<128x32xbf16>
    %28 = vector.extract_strided_slice %8 {offsets = [0, 160], sizes = [128, 32], strides = [1, 1]} : vector<128x384xbf16> to vector<128x32xbf16>
    %29 = vector.extract_strided_slice %8 {offsets = [0, 288], sizes = [128, 32], strides = [1, 1]} : vector<128x384xbf16> to vector<128x32xbf16>
    %cst_12 = arith.constant dense<0.000000e+00> : vector<128x128xf32>
    %30 = tpu.matmul %27, %28, %cst_12 {dimension_numbers = #tpu.dot_dimension_numbers<[1], [1], [0], [0], [0, 0, 1, 0], [], []>} : vector<128x32xbf16>, vector<128x32xbf16>, vector<128x128xf32> -> vector<128x128xf32>
    %cst_13 = arith.constant dense<0xFF800000> : vector<128xf32>
    %31 = vector.multi_reduction <maximumf>, %30, %cst_13 [1] : vector<128x128xf32> to vector<128xf32>
    %32 = vector.shape_cast %31 : vector<128xf32> to vector<128x1xf32>
    %33 = vector.broadcast %32 : vector<128x1xf32> to vector<128x128xf32>
    %34 = arith.subf %30, %33 : vector<128x128xf32>
    %35 = math.exp %34 : vector<128x128xf32>
    %cst_14 = arith.constant dense<0.000000e+00> : vector<128xf32>
    %36 = vector.multi_reduction <add>, %35, %cst_14 [1] : vector<128x128xf32> to vector<128xf32>
    %37 = vector.shape_cast %36 : vector<128xf32> to vector<128x1xf32>
    %38 = arith.truncf %35 : vector<128x128xf32> to vector<128x128xbf16>
    %cst_15 = arith.constant dense<0.000000e+00> : vector<128x32xf32>
    %39 = tpu.matmul %38, %29, %cst_15 {dimension_numbers = #tpu.dot_dimension_numbers<[1], [0], [0], [1], [0, 0, 1, 1], [], []>} : vector<128x128xbf16>, vector<128x32xbf16>, vector<128x32xf32> -> vector<128x32xf32>
    %40 = tpu.reciprocal %37 {approx = true} : vector<128x1xf32> -> vector<128x1xf32>
    %41 = vector.broadcast %40 : vector<128x1xf32> to vector<128x32xf32>
    %42 = arith.mulf %39, %41 : vector<128x32xf32>
    %43 = arith.truncf %42 : vector<128x32xf32> to vector<128x32xbf16>
    %c0_16 = arith.constant 0 : index
    %c32 = arith.constant 32 : index
    %44 = vector.load %arg7[%c0_16, %c32] : memref<128x128xbf16, #tpu.memory_space<vmem>>, vector<128x32xbf16>
    tpu.vector_store %arg7[%c0_16, %c32], %43 {strides = array<i32>} : memref<128x128xbf16, #tpu.memory_space<vmem>>, vector<128x32xbf16>,
    %45 = vector.extract_strided_slice %8 {offsets = [0, 64], sizes = [128, 32], strides = [1, 1]} : vector<128x384xbf16> to vector<128x32xbf16>
    %46 = vector.extract_strided_slice %8 {offsets = [0, 192], sizes = [128, 32], strides = [1, 1]} : vector<128x384xbf16> to vector<128x32xbf16>
    %47 = vector.extract_strided_slice %8 {offsets = [0, 320], sizes = [128, 32], strides = [1, 1]} : vector<128x384xbf16> to vector<128x32xbf16>
    %cst_17 = arith.constant dense<0.000000e+00> : vector<128x128xf32>
    %48 = tpu.matmul %45, %46, %cst_17 {dimension_numbers = #tpu.dot_dimension_numbers<[1], [1], [0], [0], [0, 0, 1, 0], [], []>} : vector<128x32xbf16>, vector<128x32xbf16>, vector<128x128xf32> -> vector<128x128xf32>
    %cst_18 = arith.constant dense<0xFF800000> : vector<128xf32>
    %49 = vector.multi_reduction <maximumf>, %48, %cst_18 [1] : vector<128x128xf32> to vector<128xf32>
    %50 = vector.shape_cast %49 : vector<128xf32> to vector<128x1xf32>
    %51 = vector.broadcast %50 : vector<128x1xf32> to vector<128x128xf32>
    %52 = arith.subf %48, %51 : vector<128x128xf32>
    %53 = math.exp %52 : vector<128x128xf32>
    %cst_19 = arith.constant dense<0.000000e+00> : vector<128xf32>
    %54 = vector.multi_reduction <add>, %53, %cst_19 [1] : vector<128x128xf32> to vector<128xf32>
    %55 = vector.shape_cast %54 : vector<128xf32> to vector<128x1xf32>
    %56 = arith.truncf %53 : vector<128x128xf32> to vector<128x128xbf16>
    %cst_20 = arith.constant dense<0.000000e+00> : vector<128x32xf32>
    %57 = tpu.matmul %56, %47, %cst_20 {dimension_numbers = #tpu.dot_dimension_numbers<[1], [0], [0], [1], [0, 0, 1, 1], [], []>} : vector<128x128xbf16>, vector<128x32xbf16>, vector<128x32xf32> -> vector<128x32xf32>
    %58 = tpu.reciprocal %55 {approx = true} : vector<128x1xf32> -> vector<128x1xf32>
    %59 = vector.broadcast %58 : vector<128x1xf32> to vector<128x32xf32>
    %60 = arith.mulf %57, %59 : vector<128x32xf32>
    %61 = arith.truncf %60 : vector<128x32xf32> to vector<128x32xbf16>
    %c0_21 = arith.constant 0 : index
    %c64 = arith.constant 64 : index
    %62 = vector.load %arg7[%c0_21, %c64] : memref<128x128xbf16, #tpu.memory_space<vmem>>, vector<128x32xbf16>
    tpu.vector_store %arg7[%c0_21, %c64], %61 {strides = array<i32>} : memref<128x128xbf16, #tpu.memory_space<vmem>>, vector<128x32xbf16>,
    %63 = vector.extract_strided_slice %8 {offsets = [0, 96], sizes = [128, 32], strides = [1, 1]} : vector<128x384xbf16> to vector<128x32xbf16>
    %64 = vector.extract_strided_slice %8 {offsets = [0, 224], sizes = [128, 32], strides = [1, 1]} : vector<128x384xbf16> to vector<128x32xbf16>
    %65 = vector.extract_strided_slice %8 {offsets = [0, 352], sizes = [128, 32], strides = [1, 1]} : vector<128x384xbf16> to vector<128x32xbf16>
    %cst_22 = arith.constant dense<0.000000e+00> : vector<128x128xf32>
    %66 = tpu.matmul %63, %64, %cst_22 {dimension_numbers = #tpu.dot_dimension_numbers<[1], [1], [0], [0], [0, 0, 1, 0], [], []>} : vector<128x32xbf16>, vector<128x32xbf16>, vector<128x128xf32> -> vector<128x128xf32>
    %cst_23 = arith.constant dense<0xFF800000> : vector<128xf32>
    %67 = vector.multi_reduction <maximumf>, %66, %cst_23 [1] : vector<128x128xf32> to vector<128xf32>
    %68 = vector.shape_cast %67 : vector<128xf32> to vector<128x1xf32>
    %69 = vector.broadcast %68 : vector<128x1xf32> to vector<128x128xf32>
    %70 = arith.subf %66, %69 : vector<128x128xf32>
    %71 = math.exp %70 : vector<128x128xf32>
    %cst_24 = arith.constant dense<0.000000e+00> : vector<128xf32>
    %72 = vector.multi_reduction <add>, %71, %cst_24 [1] : vector<128x128xf32> to vector<128xf32>
    %73 = vector.shape_cast %72 : vector<128xf32> to vector<128x1xf32>
    %74 = arith.truncf %71 : vector<128x128xf32> to vector<128x128xbf16>
    %cst_25 = arith.constant dense<0.000000e+00> : vector<128x32xf32>
    %75 = tpu.matmul %74, %65, %cst_25 {dimension_numbers = #tpu.dot_dimension_numbers<[1], [0], [0], [1], [0, 0, 1, 1], [], []>} : vector<128x128xbf16>, vector<128x32xbf16>, vector<128x32xf32> -> vector<128x32xf32>
    %76 = tpu.reciprocal %73 {approx = true} : vector<128x1xf32> -> vector<128x1xf32>
    %77 = vector.broadcast %76 : vector<128x1xf32> to vector<128x32xf32>
    %78 = arith.mulf %75, %77 : vector<128x32xf32>
    %79 = arith.truncf %78 : vector<128x32xf32> to vector<128x32xbf16>
    %c0_26 = arith.constant 0 : index
    %c96 = arith.constant 96 : index
    %80 = vector.load %arg7[%c0_26, %c96] : memref<128x128xbf16, #tpu.memory_space<vmem>>, vector<128x32xbf16>
    tpu.vector_store %arg7[%c0_26, %c96], %79 {strides = array<i32>} : memref<128x128xbf16, #tpu.memory_space<vmem>>, vector<128x32xbf16>,
    %c0_27 = arith.constant 0 : index
    %c0_28 = arith.constant 0 : index
    %81 = vector.load %arg7[%c0_27, %c0_28] : memref<128x128xbf16, #tpu.memory_space<vmem>>, vector<128x128xbf16>
    %c0_29 = arith.constant 0 : index
    %c0_30 = arith.constant 0 : index
    %82 = vector.load %arg4[%c0_29, %c0_30] : memref<128x128xbf16, #tpu.memory_space<vmem>>, vector<128x128xbf16>
    %cst_31 = arith.constant dense<0.000000e+00> : vector<128x128xf32>
    %83 = tpu.matmul %81, %82, %cst_31 {dimension_numbers = #tpu.dot_dimension_numbers<[1], [0], [0], [1], [0, 0, 1, 1], [], []>} : vector<128x128xbf16>, vector<128x128xbf16>, vector<128x128xf32> -> vector<128x128xf32>
    %c0_32 = arith.constant 0 : index
    %c0_33 = arith.constant 0 : index
    %84 = vector.load %arg5[%c0_32, %c0_33] : memref<1x128xf32, #tpu.memory_space<vmem>>, vector<1x128xf32>
    %85 = vector.broadcast %84 : vector<1x128xf32> to vector<128x128xf32>
    %86 = arith.addf %83, %85 : vector<128x128xf32>
    %c0_34 = arith.constant 0 : index
    %c0_35 = arith.constant 0 : index
    %c0_36 = arith.constant 0 : index
    %87 = vector.load %arg6[%c0_34, %c0_35, %c0_36] : memref<1x128x128xf32, #tpu.memory_space<vmem>>, vector<1x128x128xf32>
    %88 = vector.shape_cast %87 : vector<1x128x128xf32> to vector<128x128xf32>
    %89 = vector.shape_cast %86 : vector<128x128xf32> to vector<1x128x128xf32>
    tpu.vector_store %arg6[%c0_34, %c0_35, %c0_36], %89 {strides = array<i32>} : memref<1x128x128xf32, #tpu.memory_space<vmem>>, vector<1x128x128xf32>,
    return
  }
  func.func @transform_0(%arg0: i32) -> (i32, i32, i32) {
    %c0_i32 = arith.constant 0 : i32
    %c0_i32_0 = arith.constant 0 : i32
    %c0_i32_1 = arith.constant 0 : i32
    return %arg0, %c0_i32, %c0_i32_0 : i32, i32, i32
  }
  func.func @transform_1(%arg0: i32) -> (i32, i32) {
    %c0_i32 = arith.constant 0 : i32
    %c0_i32_0 = arith.constant 0 : i32
    %c0_i32_1 = arith.constant 0 : i32
    return %c0_i32, %c0_i32_0 : i32, i32
  }
  func.func @transform_2(%arg0: i32) -> (i32, i32) {
    %c0_i32 = arith.constant 0 : i32
    %c0_i32_0 = arith.constant 0 : i32
    %c0_i32_1 = arith.constant 0 : i32
    return %c0_i32, %c0_i32_0 : i32, i32
  }
  func.func @transform_3(%arg0: i32) -> (i32, i32) {
    %c0_i32 = arith.constant 0 : i32
    %c0_i32_0 = arith.constant 0 : i32
    %c0_i32_1 = arith.constant 0 : i32
    return %c0_i32, %c0_i32_0 : i32, i32
  }
  func.func @transform_4(%arg0: i32) -> (i32, i32) {
    %c0_i32 = arith.constant 0 : i32
    %c0_i32_0 = arith.constant 0 : i32
    %c0_i32_1 = arith.constant 0 : i32
    return %c0_i32, %c0_i32_0 : i32, i32
  }
  func.func @transform_5(%arg0: i32) -> (i32, i32, i32) {
    %c0_i32 = arith.constant 0 : i32
    %c0_i32_0 = arith.constant 0 : i32
    %c0_i32_1 = arith.constant 0 : i32
    return %arg0, %c0_i32, %c0_i32_0 : i32, i32, i32
  }
}

</mosaic_0001>

<llo_original>
// kernel: self_attention.1
$region0: #{self_attention.1}
  #allocation0 [shape = 'u32[]', space=smem, size = 0x4, offset = 0x4, fixed_abs, tag = 'smem constant byte address 0x4 - core index']
  #allocation1 [shape = 'u32[72,128]{1,0:T(1,128)}', space=vmem, size = 0x9000, scoped, tag = 'internal scratch']
  #allocation2 [shape = 'bf16[128,128]{1,0:T(8,128)(2,1)}', space=vmem, size = 0x8000, scoped, tag = 'scratch operand']
  %s0 = inlined_call_operand.hbm [shape: f32[2,128,128], index: 0, kind: input, shape index: {}]
  %s1 = inlined_call_operand.hbm [shape: bf16[128,384], index: 1, kind: input, shape index: {}]
  %s2 = inlined_call_operand.hbm [shape: f32[1,384], index: 2, kind: input, shape index: {}]
  %s3 = inlined_call_operand.hbm [shape: bf16[128,128], index: 3, kind: input, shape index: {}]
  %s4 = inlined_call_operand.hbm [shape: f32[1,128], index: 4, kind: input, shape index: {}]
  %s5 = inlined_call_operand.hbm [shape: f32[2,128,128], index: 5, kind: output, shape index: {}]
  %s6 = sld [smem:[#allocation0]]
  $region73: #{self_attention.1} parent=0
    _
  %s8 = ssub.s32 1, %s6
  %s9 = scalar_select 0, %s8, %s6
  $region1: #{self_attention.1} parent=0
    #allocation3 [shape = 'u8[131072]{0}', space=vmem, size = 0x20000, scoped, tag = 'input window, operand 0']
    #allocation4 [shape = 's32[2]{0}', space=sflag, size = 0x8, scoped, tag = 'scoped memory for self_attention.1']
    #allocation5 [shape = 's32[2]{0}', space=sflag, size = 0x8, scoped, tag = 'scoped memory for self_attention.1']
    #allocation6 [shape = 'u8[98304]{0}', space=vmem, size = 0x18000, scoped, tag = 'input window, operand 1, single buffered']
    #allocation7 [shape = 's32[1]{0}', space=sflag, size = 0x4, scoped, tag = 'scoped memory for self_attention.1']
    #allocation8 [shape = 'u8[1536]{0}', space=vmem, size = 0x800, scoped, tag = 'input window, operand 2, single buffered']
    #allocation9 [shape = 'u8[32768]{0}', space=vmem, size = 0x8000, scoped, tag = 'input window, operand 3, single buffered']
    #allocation10 [shape = 's32[1]{0}', space=sflag, size = 0x4, scoped, tag = 'scoped memory for self_attention.1']
    #allocation11 [shape = 'u8[512]{0}', space=vmem, size = 0x400, scoped, tag = 'input window, operand 4, single buffered']
    #allocation12 [shape = 'u8[131072]{0}', space=vmem, size = 0x20000, scoped, tag = 'output window, operand 0']
    %10 = vsyncpa [#allocation4], 0
    %s11 = scalar_lea.sflag [#allocation4], 1
    %12 = vsyncpa %s11, 0
    %13 = vsyncpa [#allocation7], 0
    %14 = vsyncpa [#allocation10], 0
    %15 = vsyncpa [#allocation5], 0
    %s16 = scalar_lea.sflag [#allocation5], 1
    %17 = vsyncpa %s16, 0
    loop: start=0, step=1, limit=4
    $region2: #{self_attention.1} parent=1 // loop_pre_header
      _
    $region3: #{self_attention.1} parent=1 // loop_header
      %s19 = sphi 0, %s23
      %p20 = scmp.ge.s32.totalorder %s19, 4
      %s29 = sphi 0, %s31
      %s32 = sphi 0, %s29
      %s33 = sphi 0, %s32
      %s49 = sphi 0, %s33
      %s53 = sphi 0, %s53
      %s55 = sphi 0, %s53
      %s56 = sphi 0, %s55
      %s70 = sphi 0, %s56
      %s74 = sphi 0, %s74
      %s76 = sphi 0, %s74
      %s77 = sphi 0, %s76
      %s91 = sphi 0, %s77
      %s95 = sphi 0, %s95
      %s97 = sphi 0, %s95
      %s98 = sphi 0, %s97
      %s112 = sphi 0, %s98
      %s116 = sphi 0, %s116
      %s118 = sphi 0, %s116
      %s119 = sphi 0, %s118
      %s133 = sphi 0, %s119
      %s139 = sphi 0, %s141
      %s142 = sphi 0, %s139
      %s143 = sphi 0, %s142
      %s159 = sphi 0, %s143
    $region4: #{self_attention.1} parent=1 // loop_header_branch
      %22 = sbr.rel (%p20) target = $region8
    $region5: #{self_attention.1} parent=1 // loop_body
      %s24 = ssub.s32 %s19, 1
      %s25 = ssub.s32 %s19, 2
      %s26 = sadd.s32 %s19, 1
      %s27 = ssub.s32 %s19, %s26
      %p28 = scmp.eq.s32.totalorder %s27, 0
      %s30 = sadd.s32 %s29, 1
      %s31 = scalar_select %p28, %s29, %s30
      %p34 = pneg %p28
      %p35 = scmp.eq.s32.totalorder %s19, 1
      %p36 = por %p34, %p35
      %p37 = scmp.ne.s32.totalorder %s29, %s32
      %p38 = scmp.eq.s32.totalorder %s19, 0
      %p39 = por %p37, %p38
      %p40 = scmp.ne.s32.totalorder %s29, %s32
      %p41 = scmp.eq.s32.totalorder %s24, 1
      %p42 = por %p40, %p41
      %p43 = scmp.ne.s32.totalorder %s32, %s33
      %p44 = scmp.eq.s32.totalorder %s24, 0
      %p45 = por %p43, %p44
      %p46 = scmp.ne.s32.totalorder %s32, %s33
      %p47 = scmp.eq.s32.totalorder %s25, 1
      %p48 = por %p46, %p47
      %p50 = scmp.ne.s32.totalorder %s33, %s49
      %p51 = scmp.eq.s32.totalorder %s25, 0
      %p52 = por %p50, %p51
      %s54 = sadd.s32 %s53, 1
      %p57 = scmp.eq.s32.totalorder %s19, 1
      %p58 = scmp.ne.s32.totalorder %s53, %s55
      %p59 = scmp.eq.s32.totalorder %s19, 0
      %p60 = por %p58, %p59
      %p61 = scmp.ne.s32.totalorder %s53, %s55
      %p62 = scmp.eq.s32.totalorder %s24, 1
      %p63 = por %p61, %p62
      %p64 = scmp.ne.s32.totalorder %s55, %s56
      %p65 = scmp.eq.s32.totalorder %s24, 0
      %p66 = por %p64, %p65
      %p67 = scmp.ne.s32.totalorder %s55, %s56
      %p68 = scmp.eq.s32.totalorder %s25, 1
      %p69 = por %p67, %p68
      %p71 = scmp.ne.s32.totalorder %s56, %s70
      %p72 = scmp.eq.s32.totalorder %s25, 0
      %p73 = por %p71, %p72
      %s75 = sadd.s32 %s74, 1
      %p78 = scmp.eq.s32.totalorder %s19, 1
      %p79 = scmp.ne.s32.totalorder %s74, %s76
      %p80 = scmp.eq.s32.totalorder %s19, 0
      %p81 = por %p79, %p80
      %p82 = scmp.ne.s32.totalorder %s74, %s76
      %p83 = scmp.eq.s32.totalorder %s24, 1
      %p84 = por %p82, %p83
      %p85 = scmp.ne.s32.totalorder %s76, %s77
      %p86 = scmp.eq.s32.totalorder %s24, 0
      %p87 = por %p85, %p86
      %p88 = scmp.ne.s32.totalorder %s76, %s77
      %p89 = scmp.eq.s32.totalorder %s25, 1
      %p90 = por %p88, %p89
      %p92 = scmp.ne.s32.totalorder %s77, %s91
      %p93 = scmp.eq.s32.totalorder %s25, 0
      %p94 = por %p92, %p93
      %s96 = sadd.s32 %s95, 1
      %p99 = scmp.eq.s32.totalorder %s19, 1
      %p100 = scmp.ne.s32.totalorder %s95, %s97
      %p101 = scmp.eq.s32.totalorder %s19, 0
      %p102 = por %p100, %p101
      %p103 = scmp.ne.s32.totalorder %s95, %s97
      %p104 = scmp.eq.s32.totalorder %s24, 1
      %p105 = por %p103, %p104
      %p106 = scmp.ne.s32.totalorder %s97, %s98
      %p107 = scmp.eq.s32.totalorder %s24, 0
      %p108 = por %p106, %p107
      %p109 = scmp.ne.s32.totalorder %s97, %s98
      %p110 = scmp.eq.s32.totalorder %s25, 1
      %p111 = por %p109, %p110
      %p113 = scmp.ne.s32.totalorder %s98, %s112
      %p114 = scmp.eq.s32.totalorder %s25, 0
      %p115 = por %p113, %p114
      %s117 = sadd.s32 %s116, 1
      %p120 = scmp.eq.s32.totalorder %s19, 1
      %p121 = scmp.ne.s32.totalorder %s116, %s118
      %p122 = scmp.eq.s32.totalorder %s19, 0
      %p123 = por %p121, %p122
      %p124 = scmp.ne.s32.totalorder %s116, %s118
      %p125 = scmp.eq.s32.totalorder %s24, 1
      %p126 = por %p124, %p125
      %p127 = scmp.ne.s32.totalorder %s118, %s119
      %p128 = scmp.eq.s32.totalorder %s24, 0
      %p129 = por %p127, %p128
      %p130 = scmp.ne.s32.totalorder %s118, %s119
      %p131 = scmp.eq.s32.totalorder %s25, 1
      %p132 = por %p130, %p131
      %p134 = scmp.ne.s32.totalorder %s119, %s133
      %p135 = scmp.eq.s32.totalorder %s25, 0
      %p136 = por %p134, %p135
      %s137 = ssub.s32 %s19, %s26
      %p138 = scmp.eq.s32.totalorder %s137, 0
      %s140 = sadd.s32 %s139, 1
      %s141 = scalar_select %p138, %s139, %s140
      %p144 = pneg %p138
      %p145 = scmp.eq.s32.totalorder %s19, 1
      %p146 = por %p144, %p145
      %p147 = scmp.ne.s32.totalorder %s139, %s142
      %p148 = scmp.eq.s32.totalorder %s19, 0
      %p149 = por %p147, %p148
      %p150 = scmp.ne.s32.totalorder %s139, %s142
      %p151 = scmp.eq.s32.totalorder %s24, 1
      %p152 = por %p150, %p151
      %p153 = scmp.ne.s32.totalorder %s142, %s143
      %p154 = scmp.eq.s32.totalorder %s24, 0
      %p155 = por %p153, %p154
      %p156 = scmp.ne.s32.totalorder %s142, %s143
      %p157 = scmp.eq.s32.totalorder %s25, 1
      %p158 = por %p156, %p157
      %p160 = scmp.ne.s32.totalorder %s143, %s159
      %p161 = scmp.eq.s32.totalorder %s25, 0
      %p162 = por %p160, %p161
      %p163 = scmp.le.s32.totalorder 1, %s19
      %p164 = scmp.lt.s32.totalorder %s19, 3
      %p165 = pnand %p163, %p164
      %p166 = pneg %p165
      // Predicated region
      $region9: #{self_attention.1} parent=5 // pred_check
        _
      $region10: #{self_attention.1} parent=5 // pred_check_branch
        %168 = sbr.rel (%p165) target = $region12
      $region11: #{self_attention.1} parent=5 // pred_region
        %s169 = ssub.s32 %s19, 1
        // Predicated region
        $region13: #{self_attention.1} parent=11 // pred_check
          %p170 = pneg %p66
        $region14: #{self_attention.1} parent=11 // pred_check_branch
          %172 = sbr.rel (%p170) target = $region16
        $region15: #{self_attention.1} parent=11 // pred_region
          %174 = vsyncadd [#allocation7], 0
          %s175 = sshll.u32 %s1, 4
          %s176 = int_to_ptr.hbm [resolvable:$true] %s175
          %s177 = sshll.u32 [#allocation6], 4
          %s178 = int_to_ptr.vmem [resolvable:$true] %s177
          %183 = dma.hbm_to_vmem [thread:$0]  %s176, 3072, %s178, [#allocation7], 192, 192, 12
        $region16: #{self_attention.1} parent=11 // pred_fallthru
          _
        // Predicated region
        $region17: #{self_attention.1} parent=11 // pred_check
          %p184 = pneg %p87
        $region18: #{self_attention.1} parent=11 // pred_check_branch
          %186 = sbr.rel (%p184) target = $region20
        $region19: #{self_attention.1} parent=11 // pred_region
          %188 = vsyncadd [#allocation7], 0
          %s190 = sshll.u32 %s2, 4
          %s191 = int_to_ptr.hbm [resolvable:$true] %s190
          %s192 = sshll.u32 [#allocation8], 4
          %s193 = int_to_ptr.vmem [resolvable:$true] %s192
          %195 = dma.hbm_to_vmem [thread:$0]  %s191, 48, %s193, [#allocation7]
        $region20: #{self_attention.1} parent=11 // pred_fallthru
          _
        // Predicated region
        $region21: #{self_attention.1} parent=11 // pred_check
          %p196 = pneg %p108
        $region22: #{self_attention.1} parent=11 // pred_check_branch
          %198 = sbr.rel (%p196) target = $region24
        $region23: #{self_attention.1} parent=11 // pred_region
          %200 = vsyncadd [#allocation10], 0
          %s201 = sshll.u32 %s3, 4
          %s202 = int_to_ptr.hbm [resolvable:$true] %s201
          %s203 = sshll.u32 [#allocation9], 4
          %s204 = int_to_ptr.vmem [resolvable:$true] %s203
          %209 = dma.hbm_to_vmem [thread:$0]  %s202, 1024, %s204, [#allocation10], 64, 64, 4
        $region24: #{self_attention.1} parent=11 // pred_fallthru
          _
        // Predicated region
        $region25: #{self_attention.1} parent=11 // pred_check
          %p210 = pneg %p129
        $region26: #{self_attention.1} parent=11 // pred_check_branch
          %212 = sbr.rel (%p210) target = $region28
        $region27: #{self_attention.1} parent=11 // pred_region
          %214 = vsyncadd [#allocation10], 0
          %s216 = sshll.u32 %s4, 4
          %s217 = int_to_ptr.hbm [resolvable:$true] %s216
          %s218 = sshll.u32 [#allocation11], 4
          %s219 = int_to_ptr.vmem [resolvable:$true] %s218
          %221 = dma.hbm_to_vmem [thread:$0]  %s217, 16, %s219, [#allocation10]
        $region28: #{self_attention.1} parent=11 // pred_fallthru
          _
      $region12: #{self_attention.1} parent=5 // pred_fallthru
        _
      %p222 = scmp.lt.s32.totalorder %s19, 2
      // Predicated region
      $region29: #{self_attention.1} parent=5 // pred_check
        %p223 = pneg %p222
      $region30: #{self_attention.1} parent=5 // pred_check_branch
        %225 = sbr.rel (%p223) target = $region32
      $region31: #{self_attention.1} parent=5 // pred_region
        // Predicated region
        $region33: #{self_attention.1} parent=31 // pred_check
          %p226 = pneg %p39
        $region34: #{self_attention.1} parent=31 // pred_check_branch
          %228 = sbr.rel (%p226) target = $region36
        $region35: #{self_attention.1} parent=31 // pred_region
          %s229 = sand.u32 %s29, 1
          %s230 = scalar_lea.sflag [#allocation4], %s229
          %s231 = sand.u32 %s29, 1
          %s232 = smul.addr %s231, 128
          %s233 = scalar_lea.vmem [#allocation3], %s232
          %235 = vsyncadd %s230, 0
          %s236 = smul.addr %s19, 16
          %s237 = smul.addr %s236, 8
          %s238 = scalar_lea.hbm %s0, %s237
          %s239 = sshll.u32 %s238, 4
          %s240 = int_to_ptr.hbm [resolvable:$true] %s239
          %s241 = sshll.u32 %s233, 4
          %s242 = int_to_ptr.vmem [resolvable:$true] %s241
          %247 = dma.hbm_to_vmem [thread:$0]  %s240, 2048, %s242, %s230, 128, 128, 8
        $region36: #{self_attention.1} parent=31 // pred_fallthru
          _
      $region32: #{self_attention.1} parent=5 // pred_fallthru
        _
      %p248 = scmp.le.s32.totalorder 1, %s19
      %p249 = scmp.lt.s32.totalorder %s19, 3
      %p250 = pnand %p248, %p249
      %p251 = pneg %p250
      // Predicated region
      $region37: #{self_attention.1} parent=5 // pred_check
        _
      $region38: #{self_attention.1} parent=5 // pred_check_branch
        %253 = sbr.rel (%p250) target = $region40
      $region39: #{self_attention.1} parent=5 // pred_region
        %s254 = ssub.s32 %s19, 1
        %s255 = sand.u32 %s32, 1
        %s256 = scalar_lea.sflag [#allocation4], %s255
        %s257 = sand.u32 %s32, 1
        %s258 = smul.addr %s257, 128
        %s259 = scalar_lea.vmem [#allocation3], %s258
        // Predicated region
        $region41: #{self_attention.1} parent=39 // pred_check
          %p260 = pneg %p45
        $region42: #{self_attention.1} parent=39 // pred_check_branch
          %262 = sbr.rel (%p260) target = $region44
        $region43: #{self_attention.1} parent=39 // pred_region
          %264 = dma.done %s256, 2048
        $region44: #{self_attention.1} parent=39 // pred_fallthru
          _
        // Predicated region
        $region45: #{self_attention.1} parent=39 // pred_check
          %p265 = pneg %p66
        $region46: #{self_attention.1} parent=39 // pred_check_branch
          %267 = sbr.rel (%p265) target = $region48
        $region47: #{self_attention.1} parent=39 // pred_region
          %269 = dma.done [#allocation7], 3072
        $region48: #{self_attention.1} parent=39 // pred_fallthru
          _
        // Predicated region
        $region49: #{self_attention.1} parent=39 // pred_check
          %p270 = pneg %p87
        $region50: #{self_attention.1} parent=39 // pred_check_branch
          %272 = sbr.rel (%p270) target = $region52
        $region51: #{self_attention.1} parent=39 // pred_region
          %274 = dma.done [#allocation7], 48
        $region52: #{self_attention.1} parent=39 // pred_fallthru
          _
        // Predicated region
        $region53: #{self_attention.1} parent=39 // pred_check
          %p275 = pneg %p108
        $region54: #{self_attention.1} parent=39 // pred_check_branch
          %277 = sbr.rel (%p275) target = $region56
        $region55: #{self_attention.1} parent=39 // pred_region
          %279 = dma.done [#allocation10], 1024
        $region56: #{self_attention.1} parent=39 // pred_fallthru
          _
        // Predicated region
        $region57: #{self_attention.1} parent=39 // pred_check
          %p280 = pneg %p129
        $region58: #{self_attention.1} parent=39 // pred_check_branch
          %282 = sbr.rel (%p280) target = $region60
        $region59: #{self_attention.1} parent=39 // pred_region
          %284 = dma.done [#allocation10], 16
        $region60: #{self_attention.1} parent=39 // pred_fallthru
          _
        %s285 = sand.u32 %s32, 1
        %s286 = scalar_lea.sflag [#allocation4], %s285
        %s287 = sand.u32 %s32, 1
        %s288 = smul.addr %s287, 128
        %s289 = scalar_lea.vmem [#allocation3], %s288
        %p290 = pneg %p45
        %p291 = pneg %p42
        %p292 = pneg %p66
        %p293 = pneg %p63
        %p294 = pneg %p87
        %p295 = pneg %p84
        %p296 = pneg %p108
        %p297 = pneg %p105
        %p298 = pneg %p129
        %p299 = pneg %p126
        %p300 = pneg %p155
        %p301 = pneg %p152
        %s302 = sand.u32 %s142, 1
        %s303 = scalar_lea.sflag [#allocation5], %s302
        %s304 = sand.u32 %s142, 1
        %s305 = smul.addr %s304, 128
        %s306 = scalar_lea.vmem [#allocation12], %s305
        %v307 = vld [vmem:[%s259] sm:$0xff]
        %v308 = vld [vmem:[%s259 + $0x8] sm:$0xff]
        %v309 = vld [vmem:[%s259 + $0x10] sm:$0xff]
        %v310 = vld [vmem:[%s259 + $0x18] sm:$0xff]
        %v311 = vld [vmem:[%s259 + $0x20] sm:$0xff]
        %v312 = vld [vmem:[%s259 + $0x28] sm:$0xff]
        %v313 = vld [vmem:[%s259 + $0x30] sm:$0xff]
        %v314 = vld [vmem:[%s259 + $0x38] sm:$0xff]
        %v315 = vld [vmem:[%s259 + $0x40] sm:$0xff]
        %v316 = vld [vmem:[%s259 + $0x48] sm:$0xff]
        %v317 = vld [vmem:[%s259 + $0x50] sm:$0xff]
        %v318 = vld [vmem:[%s259 + $0x58] sm:$0xff]
        %v319 = vld [vmem:[%s259 + $0x60] sm:$0xff]
        %v320 = vld [vmem:[%s259 + $0x68] sm:$0xff]
        %v321 = vld [vmem:[%s259 + $0x70] sm:$0xff]
        %v322 = vld [vmem:[%s259 + $0x78] sm:$0xff]
        %v323 = vpack.c.bf16 %v308, %v307
        %v324 = vpack.c.bf16 %v310, %v309
        %v325 = vpack.c.bf16 %v312, %v311
        %v326 = vpack.c.bf16 %v314, %v313
        %v327 = vpack.c.bf16 %v316, %v315
        %v328 = vpack.c.bf16 %v318, %v317
        %v329 = vpack.c.bf16 %v320, %v319
        %v330 = vpack.c.bf16 %v322, %v321
        %v331 = vld [vmem:[#allocation6] sm:$0xff]
        %v332 = vld [vmem:[#allocation6 + $0x8] sm:$0xf]
        %v333 = vld [vmem:[#allocation6 + $0xc] sm:$0xff]
        %v334 = vld [vmem:[#allocation6 + $0x14] sm:$0xf]
        %v335 = vld [vmem:[#allocation6 + $0x18] sm:$0xff]
        %v336 = vld [vmem:[#allocation6 + $0x20] sm:$0xf]
        %v337 = vld [vmem:[#allocation6 + $0x24] sm:$0xff]
        %v338 = vld [vmem:[#allocation6 + $0x2c] sm:$0xf]
        %v339 = vld [vmem:[#allocation6 + $0x30] sm:$0xff]
        %v340 = vld [vmem:[#allocation6 + $0x38] sm:$0xf]
        %v341 = vld [vmem:[#allocation6 + $0x3c] sm:$0xff]
        %v342 = vld [vmem:[#allocation6 + $0x44] sm:$0xf]
        %v343 = vld [vmem:[#allocation6 + $0x48] sm:$0xff]
        %v344 = vld [vmem:[#allocation6 + $0x50] sm:$0xf]
        %v345 = vld [vmem:[#allocation6 + $0x54] sm:$0xff]
        %v346 = vld [vmem:[#allocation6 + $0x5c] sm:$0xf]
        %v347 = vld [vmem:[#allocation6 + $0x60] sm:$0xff]
        %v348 = vld [vmem:[#allocation6 + $0x68] sm:$0xf]
        %v349 = vld [vmem:[#allocation6 + $0x6c] sm:$0xff]
        %v350 = vld [vmem:[#allocation6 + $0x74] sm:$0xf]
        %v351 = vld [vmem:[#allocation6 + $0x78] sm:$0xff]
        %v352 = vld [vmem:[#allocation6 + $0x80] sm:$0xf]
        %v353 = vld [vmem:[#allocation6 + $0x84] sm:$0xff]
        %v354 = vld [vmem:[#allocation6 + $0x8c] sm:$0xf]
        %v355 = vld [vmem:[#allocation6 + $0x90] sm:$0xff]
        %v356 = vld [vmem:[#allocation6 + $0x98] sm:$0xf]
        %v357 = vld [vmem:[#allocation6 + $0x9c] sm:$0xff]
        %v358 = vld [vmem:[#allocation6 + $0xa4] sm:$0xf]
        %v359 = vld [vmem:[#allocation6 + $0xa8] sm:$0xff]
        %v360 = vld [vmem:[#allocation6 + $0xb0] sm:$0xf]
        %v361 = vld [vmem:[#allocation6 + $0xb4] sm:$0xff]
        %v362 = vld [vmem:[#allocation6 + $0xbc] sm:$0xf]
        %v363 = vld [vmem:[#allocation8] sm:$0x7]
        %v365 = vperm.slane %v363, 0
        %v366 = vperm.slane %v363, 1
        %v367 = vperm.slane %v363, 2
        %v403 = vunpack.c.l.b16 %v331
        %v404 = vunpack.c.h.b16 %v331
        %v405 = vunpack.c.l.b16 %v332
        %v406 = vunpack.c.l.b16 %v333
        %v407 = vunpack.c.h.b16 %v333
        %v408 = vunpack.c.l.b16 %v334
        %v409 = vunpack.c.l.b16 %v335
        %v410 = vunpack.c.h.b16 %v335
        %v411 = vunpack.c.l.b16 %v336
        %v412 = vunpack.c.l.b16 %v337
        %v413 = vunpack.c.h.b16 %v337
        %v414 = vunpack.c.l.b16 %v338
        %v415 = vunpack.c.l.b16 %v339
        %v416 = vunpack.c.h.b16 %v339
        %v417 = vunpack.c.l.b16 %v340
        %v418 = vunpack.c.l.b16 %v341
        %v419 = vunpack.c.h.b16 %v341
        %v420 = vunpack.c.l.b16 %v342
        %v421 = vunpack.c.l.b16 %v343
        %v422 = vunpack.c.h.b16 %v343
        %v423 = vunpack.c.l.b16 %v344
        %v424 = vunpack.c.l.b16 %v345
        %v425 = vunpack.c.h.b16 %v345
        %v426 = vunpack.c.l.b16 %v346
        %v427 = vunpack.c.l.b16 %v347
        %v428 = vunpack.c.h.b16 %v347
        %v429 = vunpack.c.l.b16 %v348
        %v430 = vunpack.c.l.b16 %v349
        %v431 = vunpack.c.h.b16 %v349
        %v432 = vunpack.c.l.b16 %v350
        %v433 = vunpack.c.l.b16 %v351
        %v434 = vunpack.c.h.b16 %v351
        %v435 = vunpack.c.l.b16 %v352
        %v436 = vunpack.c.l.b16 %v353
        %v437 = vunpack.c.h.b16 %v353
        %v438 = vunpack.c.l.b16 %v354
        %v439 = vunpack.c.l.b16 %v355
        %v440 = vunpack.c.h.b16 %v355
        %v441 = vunpack.c.l.b16 %v356
        %v442 = vunpack.c.l.b16 %v357
        %v443 = vunpack.c.h.b16 %v357
        %v444 = vunpack.c.l.b16 %v358
        %v445 = vunpack.c.l.b16 %v359
        %v446 = vunpack.c.h.b16 %v359
        %v447 = vunpack.c.l.b16 %v360
        %v448 = vunpack.c.l.b16 %v361
        %v449 = vunpack.c.h.b16 %v361
        %v450 = vunpack.c.l.b16 %v362
        %v451 = vpack.c.b16 %v406, %v403
        %v452 = vpack.c.b16 %v407, %v404
        %v453 = vpack.c.b16 %v408, %v405
        %v454 = vpack.c.b16 %v412, %v409
        %v455 = vpack.c.b16 %v413, %v410
        %v456 = vpack.c.b16 %v414, %v411
        %v457 = vpack.c.b16 %v418, %v415
        %v458 = vpack.c.b16 %v419, %v416
        %v459 = vpack.c.b16 %v420, %v417
        %v460 = vpack.c.b16 %v424, %v421
        %v461 = vpack.c.b16 %v425, %v422
        %v462 = vpack.c.b16 %v426, %v423
        %v463 = vpack.c.b16 %v430, %v427
        %v464 = vpack.c.b16 %v431, %v428
        %v465 = vpack.c.b16 %v432, %v429
        %v466 = vpack.c.b16 %v436, %v433
        %v467 = vpack.c.b16 %v437, %v434
        %v468 = vpack.c.b16 %v438, %v435
        %v469 = vpack.c.b16 %v442, %v439
        %v470 = vpack.c.b16 %v443, %v440
        %v471 = vpack.c.b16 %v444, %v441
        %v472 = vpack.c.b16 %v448, %v445
        %v473 = vpack.c.b16 %v449, %v446
        %v474 = vpack.c.b16 %v450, %v447
        %499 = vmatpush.bf16.msra.mxu0 %v472
        %500 = vmatpush.bf16.msra.mxu0 %v469
        %501 = vmatpush.bf16.msra.mxu0 %v466
        %502 = vmatpush.bf16.msra.mxu0 %v463
        %503 = vmatpush.bf16.msra.mxu0 %v460
        %504 = vmatpush.bf16.msra.mxu0 %v457
        %505 = vmatpush.bf16.msra.mxu0 %v454
        %506 = vmatpush.bf16.msra.mxu0 %v451
        %507 = vmatmul.bf16.gmra.mxu0 %v323
        %v508 = vpop.f32.mrf.mxu0
        %v509 = vadd.f32 %v365, %v508
        %v510 = vpop.f32.mrf.mxu0
        %v511 = vadd.f32 %v365, %v510
        %512 = vmatmul.bf16.gmra.mxu0 %v324
        %v513 = vpop.f32.mrf.mxu0
        %v514 = vadd.f32 %v365, %v513
        %v515 = vpop.f32.mrf.mxu0
        %v516 = vadd.f32 %v365, %v515
        %517 = vmatmul.bf16.gmra.mxu0 %v325
        %v518 = vpop.f32.mrf.mxu0
        %v519 = vadd.f32 %v365, %v518
        %v520 = vpop.f32.mrf.mxu0
        %v521 = vadd.f32 %v365, %v520
        %522 = vmatmul.bf16.gmra.mxu0 %v326
        %v523 = vpop.f32.mrf.mxu0
        %v524 = vadd.f32 %v365, %v523
        %v525 = vpop.f32.mrf.mxu0
        %v526 = vadd.f32 %v365, %v525
        %527 = vmatmul.bf16.gmra.mxu0 %v327
        %v528 = vpop.f32.mrf.mxu0
        %v529 = vadd.f32 %v365, %v528
        %v530 = vpop.f32.mrf.mxu0
        %v531 = vadd.f32 %v365, %v530
        %532 = vmatmul.bf16.gmra.mxu0 %v328
        %v533 = vpop.f32.mrf.mxu0
        %v534 = vadd.f32 %v365, %v533
        %v535 = vpop.f32.mrf.mxu0
        %v536 = vadd.f32 %v365, %v535
        %537 = vmatmul.bf16.gmra.mxu0 %v329
        %v538 = vpop.f32.mrf.mxu0
        %v539 = vadd.f32 %v365, %v538
        %v540 = vpop.f32.mrf.mxu0
        %v541 = vadd.f32 %v365, %v540
        %542 = vmatmul.bf16.gmra.mxu0 %v330
        %v543 = vpop.f32.mrf.mxu0
        %v544 = vadd.f32 %v365, %v543
        %v545 = vpop.f32.mrf.mxu0
        %v546 = vadd.f32 %v365, %v545
        %547 = vdwg.mxu0
        %548 = vmatpush.bf16.msra.mxu0 %v473
        %549 = vmatpush.bf16.msra.mxu0 %v470
        %550 = vmatpush.bf16.msra.mxu0 %v467
        %551 = vmatpush.bf16.msra.mxu0 %v464
        %552 = vmatpush.bf16.msra.mxu0 %v461
        %553 = vmatpush.bf16.msra.mxu0 %v458
        %554 = vmatpush.bf16.msra.mxu0 %v455
        %555 = vmatpush.bf16.msra.mxu0 %v452
        %556 = vmatmul.bf16.gmra.mxu0 %v323
        %v557 = vpop.f32.mrf.mxu0
        %v558 = vadd.f32 %v366, %v557
        %v559 = vpop.f32.mrf.mxu0
        %v560 = vadd.f32 %v366, %v559
        %561 = vmatmul.bf16.gmra.mxu0 %v324
        %v562 = vpop.f32.mrf.mxu0
        %v563 = vadd.f32 %v366, %v562
        %v564 = vpop.f32.mrf.mxu0
        %v565 = vadd.f32 %v366, %v564
        %566 = vmatmul.bf16.gmra.mxu0 %v325
        %v567 = vpop.f32.mrf.mxu0
        %v568 = vadd.f32 %v366, %v567
        %v569 = vpop.f32.mrf.mxu0
        %v570 = vadd.f32 %v366, %v569
        %571 = vmatmul.bf16.gmra.mxu0 %v326
        %v572 = vpop.f32.mrf.mxu0
        %v573 = vadd.f32 %v366, %v572
        %v574 = vpop.f32.mrf.mxu0
        %v575 = vadd.f32 %v366, %v574
        %576 = vmatmul.bf16.gmra.mxu0 %v327
        %v577 = vpop.f32.mrf.mxu0
        %v578 = vadd.f32 %v366, %v577
        %v579 = vpop.f32.mrf.mxu0
        %v580 = vadd.f32 %v366, %v579
        %581 = vmatmul.bf16.gmra.mxu0 %v328
        %v582 = vpop.f32.mrf.mxu0
        %v583 = vadd.f32 %v366, %v582
        %v584 = vpop.f32.mrf.mxu0
        %v585 = vadd.f32 %v366, %v584
        %586 = vmatmul.bf16.gmra.mxu0 %v329
        %v587 = vpop.f32.mrf.mxu0
        %v588 = vadd.f32 %v366, %v587
        %v589 = vpop.f32.mrf.mxu0
        %v590 = vadd.f32 %v366, %v589
        %591 = vmatmul.bf16.gmra.mxu0 %v330
        %v592 = vpop.f32.mrf.mxu0
        %v593 = vadd.f32 %v366, %v592
        %v594 = vpop.f32.mrf.mxu0
        %v595 = vadd.f32 %v366, %v594
        %596 = vdwg.mxu0
        %597 = vmatpush.bf16.msra.mxu0 %v474
        %598 = vmatpush.bf16.msra.mxu0 %v471
        %599 = vmatpush.bf16.msra.mxu0 %v468
        %600 = vmatpush.bf16.msra.mxu0 %v465
        %601 = vmatpush.bf16.msra.mxu0 %v462
        %602 = vmatpush.bf16.msra.mxu0 %v459
        %603 = vmatpush.bf16.msra.mxu0 %v456
        %604 = vmatpush.bf16.msra.mxu0 %v453
        %605 = vmatmul.bf16.gmra.mxu0 %v323
        %v606 = vpop.f32.mrf.mxu0
        %v607 = vadd.f32 %v367, %v606
        %v608 = vpop.f32.mrf.mxu0
        %v609 = vadd.f32 %v367, %v608
        %610 = vmatmul.bf16.gmra.mxu0 %v324
        %v611 = vpop.f32.mrf.mxu0
        %v612 = vadd.f32 %v367, %v611
        %v613 = vpop.f32.mrf.mxu0
        %v614 = vadd.f32 %v367, %v613
        %615 = vmatmul.bf16.gmra.mxu0 %v325
        %v616 = vpop.f32.mrf.mxu0
        %v617 = vadd.f32 %v367, %v616
        %v618 = vpop.f32.mrf.mxu0
        %v619 = vadd.f32 %v367, %v618
        %620 = vmatmul.bf16.gmra.mxu0 %v326
        %v621 = vpop.f32.mrf.mxu0
        %v622 = vadd.f32 %v367, %v621
        %v623 = vpop.f32.mrf.mxu0
        %v624 = vadd.f32 %v367, %v623
        %625 = vmatmul.bf16.gmra.mxu0 %v327
        %v626 = vpop.f32.mrf.mxu0
        %v627 = vadd.f32 %v367, %v626
        %v628 = vpop.f32.mrf.mxu0
        %v629 = vadd.f32 %v367, %v628
        %630 = vmatmul.bf16.gmra.mxu0 %v328
        %v631 = vpop.f32.mrf.mxu0
        %v632 = vadd.f32 %v367, %v631
        %v633 = vpop.f32.mrf.mxu0
        %v634 = vadd.f32 %v367, %v633
        %635 = vmatmul.bf16.gmra.mxu0 %v329
        %v636 = vpop.f32.mrf.mxu0
        %v637 = vadd.f32 %v367, %v636
        %v638 = vpop.f32.mrf.mxu0
        %v639 = vadd.f32 %v367, %v638
        %640 = vmatmul.bf16.gmra.mxu0 %v330
        %v641 = vpop.f32.mrf.mxu0
        %v642 = vadd.f32 %v367, %v641
        %v643 = vpop.f32.mrf.mxu0
        %v644 = vadd.f32 %v367, %v643
        %645 = vdwg.mxu0
        %v646 = vpack.c.bf16 %v558, %v509
        %v647 = vpack.c.bf16 %v607, %v607
        %v648 = vpack.c.bf16 %v560, %v511
        %v649 = vpack.c.bf16 %v609, %v609
        %v650 = vpack.c.bf16 %v563, %v514
        %v651 = vpack.c.bf16 %v612, %v612
        %v652 = vpack.c.bf16 %v565, %v516
        %v653 = vpack.c.bf16 %v614, %v614
        %v654 = vpack.c.bf16 %v568, %v519
        %v655 = vpack.c.bf16 %v617, %v617
        %v656 = vpack.c.bf16 %v570, %v521
        %v657 = vpack.c.bf16 %v619, %v619
        %v658 = vpack.c.bf16 %v573, %v524
        %v659 = vpack.c.bf16 %v622, %v622
        %v660 = vpack.c.bf16 %v575, %v526
        %v661 = vpack.c.bf16 %v624, %v624
        %v662 = vpack.c.bf16 %v578, %v529
        %v663 = vpack.c.bf16 %v627, %v627
        %v664 = vpack.c.bf16 %v580, %v531
        %v665 = vpack.c.bf16 %v629, %v629
        %v666 = vpack.c.bf16 %v583, %v534
        %v667 = vpack.c.bf16 %v632, %v632
        %v668 = vpack.c.bf16 %v585, %v536
        %v669 = vpack.c.bf16 %v634, %v634
        %v670 = vpack.c.bf16 %v588, %v539
        %v671 = vpack.c.bf16 %v637, %v637
        %v672 = vpack.c.bf16 %v590, %v541
        %v673 = vpack.c.bf16 %v639, %v639
        %v674 = vpack.c.bf16 %v593, %v544
        %v675 = vpack.c.bf16 %v642, %v642
        %v676 = vpack.c.bf16 %v595, %v546
        %v677 = vpack.c.bf16 %v644, %v644
        %v694 = vunpack.c.l.b16 %v646
        %v695 = vunpack.c.l.b16 %v648
        %v696 = vunpack.c.l.b16 %v650
        %v697 = vunpack.c.l.b16 %v652
        %v698 = vunpack.c.l.b16 %v654
        %v699 = vunpack.c.l.b16 %v656
        %v700 = vunpack.c.l.b16 %v658
        %v701 = vunpack.c.l.b16 %v660
        %v702 = vunpack.c.l.b16 %v662
        %v703 = vunpack.c.l.b16 %v664
        %v704 = vunpack.c.l.b16 %v666
        %v705 = vunpack.c.l.b16 %v668
        %v706 = vunpack.c.l.b16 %v670
        %v707 = vunpack.c.l.b16 %v672
        %v708 = vunpack.c.l.b16 %v674
        %v709 = vunpack.c.l.b16 %v676
        %v710 = vpack.c.b16 %v695, %v694
        %v711 = vpack.c.b16 %v697, %v696
        %v712 = vpack.c.b16 %v699, %v698
        %v713 = vpack.c.b16 %v701, %v700
        %v714 = vpack.c.b16 %v703, %v702
        %v715 = vpack.c.b16 %v705, %v704
        %v716 = vpack.c.b16 %v707, %v706
        %v717 = vpack.c.b16 %v709, %v708
        %v718 = vunpack.c.h.b16 %v646
        %v719 = vunpack.c.h.b16 %v648
        %v720 = vunpack.c.h.b16 %v650
        %v721 = vunpack.c.h.b16 %v652
        %v722 = vunpack.c.h.b16 %v654
        %v723 = vunpack.c.h.b16 %v656
        %v724 = vunpack.c.h.b16 %v658
        %v725 = vunpack.c.h.b16 %v660
        %v726 = vunpack.c.h.b16 %v662
        %v727 = vunpack.c.h.b16 %v664
        %v728 = vunpack.c.h.b16 %v666
        %v729 = vunpack.c.h.b16 %v668
        %v730 = vunpack.c.h.b16 %v670
        %v731 = vunpack.c.h.b16 %v672
        %v732 = vunpack.c.h.b16 %v674
        %v733 = vunpack.c.h.b16 %v676
        %v734 = vpack.c.b16 %v719, %v718
        %v735 = vpack.c.b16 %v721, %v720
        %v736 = vpack.c.b16 %v723, %v722
        %v737 = vpack.c.b16 %v725, %v724
        %v738 = vpack.c.b16 %v727, %v726
        %v739 = vpack.c.b16 %v729, %v728
        %v740 = vpack.c.b16 %v731, %v730
        %v741 = vpack.c.b16 %v733, %v732
        %vm742 = vcmask 261120
        %v744 = vsel %vm742, %v710, 0
        %v747 = vsel %vm742, %v711, 0
        %v750 = vsel %vm742, %v712, 0
        %v753 = vsel %vm742, %v713, 0
        %v756 = vsel %vm742, %v714, 0
        %v759 = vsel %vm742, %v715, 0
        %v762 = vsel %vm742, %v716, 0
        %v765 = vsel %vm742, %v717, 0
        %v768 = vsel %vm742, %v734, 0
        %v771 = vsel %vm742, %v735, 0
        %v774 = vsel %vm742, %v736, 0
        %v777 = vsel %vm742, %v737, 0
        %v780 = vsel %vm742, %v738, 0
        %v783 = vsel %vm742, %v739, 0
        %v786 = vsel %vm742, %v740, 0
        %v789 = vsel %vm742, %v741, 0
        %791 = vmatpush.bf16.xpose.msra.mxu0 %v789
        %792 = vmatpush.bf16.xpose.msra.mxu0 %v786
        %793 = vmatpush.bf16.xpose.msra.mxu0 %v783
        %794 = vmatpush.bf16.xpose.msra.mxu0 %v780
        %795 = vmatpush.bf16.xpose.msra.mxu0 %v777
        %796 = vmatpush.bf16.xpose.msra.mxu0 %v774
        %797 = vmatpush.bf16.xpose.msra.mxu0 %v771
        %798 = vmatpush.bf16.xpose.msra.mxu0 %v768
        %799 = vmatmul.bf16.gmra.mxu0 %v744
        %v800 = vpop.f32.mrf.mxu0
        %v801 = vadd.f32 0.0, %v800
        %v802 = vpop.f32.mrf.mxu0
        %v803 = vadd.f32 0.0, %v802
        %804 = vmatmul.bf16.gmra.mxu0 %v747
        %v805 = vpop.f32.mrf.mxu0
        %v806 = vadd.f32 0.0, %v805
        %v807 = vpop.f32.mrf.mxu0
        %v808 = vadd.f32 0.0, %v807
        %809 = vmatmul.bf16.gmra.mxu0 %v750
        %v810 = vpop.f32.mrf.mxu0
        %v811 = vadd.f32 0.0, %v810
        %v812 = vpop.f32.mrf.mxu0
        %v813 = vadd.f32 0.0, %v812
        %814 = vmatmul.bf16.gmra.mxu0 %v753
        %v815 = vpop.f32.mrf.mxu0
        %v816 = vadd.f32 0.0, %v815
        %v817 = vpop.f32.mrf.mxu0
        %v818 = vadd.f32 0.0, %v817
        %819 = vmatmul.bf16.gmra.mxu0 %v756
        %v820 = vpop.f32.mrf.mxu0
        %v821 = vadd.f32 0.0, %v820
        %v822 = vpop.f32.mrf.mxu0
        %v823 = vadd.f32 0.0, %v822
        %824 = vmatmul.bf16.gmra.mxu0 %v759
        %v825 = vpop.f32.mrf.mxu0
        %v826 = vadd.f32 0.0, %v825
        %v827 = vpop.f32.mrf.mxu0
        %v828 = vadd.f32 0.0, %v827
        %829 = vmatmul.bf16.gmra.mxu0 %v762
        %v830 = vpop.f32.mrf.mxu0
        %v831 = vadd.f32 0.0, %v830
        %v832 = vpop.f32.mrf.mxu0
        %v833 = vadd.f32 0.0, %v832
        %834 = vmatmul.bf16.gmra.mxu0 %v765
        %v835 = vpop.f32.mrf.mxu0
        %v836 = vadd.f32 0.0, %v835
        %v837 = vpop.f32.mrf.mxu0
        %v838 = vadd.f32 0.0, %v837
        %839 = vdwg.mxu0
        %840 = vmax.xlane.f32.xlu0 %v801
        %v841 = vpop.xlane.xlu0 %840
        %842 = vmax.xlane.f32.xlu0 %v803
        %v843 = vpop.xlane.xlu0 %842
        %844 = vmax.xlane.f32.xlu0 %v806
        %v845 = vpop.xlane.xlu0 %844
        %846 = vmax.xlane.f32.xlu0 %v808
        %v847 = vpop.xlane.xlu0 %846
        %848 = vmax.xlane.f32.xlu0 %v811
        %v849 = vpop.xlane.xlu0 %848
        %850 = vmax.xlane.f32.xlu0 %v813
        %v851 = vpop.xlane.xlu0 %850
        %852 = vmax.xlane.f32.xlu0 %v816
        %v853 = vpop.xlane.xlu0 %852
        %854 = vmax.xlane.f32.xlu0 %v818
        %v855 = vpop.xlane.xlu0 %854
        %856 = vmax.xlane.f32.xlu0 %v821
        %v857 = vpop.xlane.xlu0 %856
        %858 = vmax.xlane.f32.xlu0 %v823
        %v859 = vpop.xlane.xlu0 %858
        %860 = vmax.xlane.f32.xlu0 %v826
        %v861 = vpop.xlane.xlu0 %860
        %862 = vmax.xlane.f32.xlu0 %v828
        %v863 = vpop.xlane.xlu0 %862
        %864 = vmax.xlane.f32.xlu0 %v831
        %v865 = vpop.xlane.xlu0 %864
        %866 = vmax.xlane.f32.xlu0 %v833
        %v867 = vpop.xlane.xlu0 %866
        %868 = vmax.xlane.f32.xlu0 %v836
        %v869 = vpop.xlane.xlu0 %868
        %870 = vmax.xlane.f32.xlu0 %v838
        %v871 = vpop.xlane.xlu0 %870
        %v872 = vsub.f32 %v801, %v841
        %v873 = vsub.f32 %v803, %v843
        %v874 = vsub.f32 %v806, %v845
        %v875 = vsub.f32 %v808, %v847
        %v876 = vsub.f32 %v811, %v849
        %v877 = vsub.f32 %v813, %v851
        %v878 = vsub.f32 %v816, %v853
        %v879 = vsub.f32 %v818, %v855
        %v880 = vsub.f32 %v821, %v857
        %v881 = vsub.f32 %v823, %v859
        %v882 = vsub.f32 %v826, %v861
        %v883 = vsub.f32 %v828, %v863
        %v884 = vsub.f32 %v831, %v865
        %v885 = vsub.f32 %v833, %v867
        %v886 = vsub.f32 %v836, %v869
        %v887 = vsub.f32 %v838, %v871
        %v888 = vmul.f32 %v872, 1.442695
        %v889 = vpow.pop %v888
        %v890 = vmul.f32 %v873, 1.442695
        %v891 = vpow.pop %v890
        %v892 = vmul.f32 %v874, 1.442695
        %v893 = vpow.pop %v892
        %v894 = vmul.f32 %v875, 1.442695
        %v895 = vpow.pop %v894
        %v896 = vmul.f32 %v876, 1.442695
        %v897 = vpow.pop %v896
        %v898 = vmul.f32 %v877, 1.442695
        %v899 = vpow.pop %v898
        %v900 = vmul.f32 %v878, 1.442695
        %v901 = vpow.pop %v900
        %v902 = vmul.f32 %v879, 1.442695
        %v903 = vpow.pop %v902
        %v904 = vmul.f32 %v880, 1.442695
        %v905 = vpow.pop %v904
        %v906 = vmul.f32 %v881, 1.442695
        %v907 = vpow.pop %v906
        %v908 = vmul.f32 %v882, 1.442695
        %v909 = vpow.pop %v908
        %v910 = vmul.f32 %v883, 1.442695
        %v911 = vpow.pop %v910
        %v912 = vmul.f32 %v884, 1.442695
        %v913 = vpow.pop %v912
        %v914 = vmul.f32 %v885, 1.442695
        %v915 = vpow.pop %v914
        %v916 = vmul.f32 %v886, 1.442695
        %v917 = vpow.pop %v916
        %v918 = vmul.f32 %v887, 1.442695
        %v919 = vpow.pop %v918
        %920 = vadd.xlane.f32.xlu0 %v889
        %v921 = vpop.xlane.xlu0 %920
        %922 = vadd.xlane.f32.xlu0 %v891
        %v923 = vpop.xlane.xlu0 %922
        %924 = vadd.xlane.f32.xlu0 %v893
        %v925 = vpop.xlane.xlu0 %924
        %926 = vadd.xlane.f32.xlu0 %v895
        %v927 = vpop.xlane.xlu0 %926
        %928 = vadd.xlane.f32.xlu0 %v897
        %v929 = vpop.xlane.xlu0 %928
        %930 = vadd.xlane.f32.xlu0 %v899
        %v931 = vpop.xlane.xlu0 %930
        %932 = vadd.xlane.f32.xlu0 %v901
        %v933 = vpop.xlane.xlu0 %932
        %934 = vadd.xlane.f32.xlu0 %v903
        %v935 = vpop.xlane.xlu0 %934
        %936 = vadd.xlane.f32.xlu0 %v905
        %v937 = vpop.xlane.xlu0 %936
        %938 = vadd.xlane.f32.xlu0 %v907
        %v939 = vpop.xlane.xlu0 %938
        %940 = vadd.xlane.f32.xlu0 %v909
        %v941 = vpop.xlane.xlu0 %940
        %942 = vadd.xlane.f32.xlu0 %v911
        %v943 = vpop.xlane.xlu0 %942
        %944 = vadd.xlane.f32.xlu0 %v913
        %v945 = vpop.xlane.xlu0 %944
        %946 = vadd.xlane.f32.xlu0 %v915
        %v947 = vpop.xlane.xlu0 %946
        %948 = vadd.xlane.f32.xlu0 %v917
        %v949 = vpop.xlane.xlu0 %948
        %950 = vadd.xlane.f32.xlu0 %v919
        %v951 = vpop.xlane.xlu0 %950
        %v952 = vpack.c.bf16 %v891, %v889
        %v953 = vpack.c.bf16 %v895, %v893
        %v954 = vpack.c.bf16 %v899, %v897
        %v955 = vpack.c.bf16 %v903, %v901
        %v956 = vpack.c.bf16 %v907, %v905
        %v957 = vpack.c.bf16 %v911, %v909
        %v958 = vpack.c.bf16 %v915, %v913
        %v959 = vpack.c.bf16 %v919, %v917
        %v976 = vunpack.c.l.b16 %v647
        %v977 = vunpack.c.l.b16 %v649
        %v978 = vunpack.c.l.b16 %v651
        %v979 = vunpack.c.l.b16 %v653
        %v980 = vunpack.c.l.b16 %v655
        %v981 = vunpack.c.l.b16 %v657
        %v982 = vunpack.c.l.b16 %v659
        %v983 = vunpack.c.l.b16 %v661
        %v984 = vunpack.c.l.b16 %v663
        %v985 = vunpack.c.l.b16 %v665
        %v986 = vunpack.c.l.b16 %v667
        %v987 = vunpack.c.l.b16 %v669
        %v988 = vunpack.c.l.b16 %v671
        %v989 = vunpack.c.l.b16 %v673
        %v990 = vunpack.c.l.b16 %v675
        %v991 = vunpack.c.l.b16 %v677
        %v992 = vpack.c.b16 %v977, %v976
        %v993 = vpack.c.b16 %v979, %v978
        %v994 = vpack.c.b16 %v981, %v980
        %v995 = vpack.c.b16 %v983, %v982
        %v996 = vpack.c.b16 %v985, %v984
        %v997 = vpack.c.b16 %v987, %v986
        %v998 = vpack.c.b16 %v989, %v988
        %v999 = vpack.c.b16 %v991, %v990
        %1008 = vmatpush.bf16.msra.mxu0 %v999
        %1009 = vmatpush.bf16.msra.mxu0 %v998
        %1010 = vmatpush.bf16.msra.mxu0 %v997
        %1011 = vmatpush.bf16.msra.mxu0 %v996
        %1012 = vmatpush.bf16.msra.mxu0 %v995
        %1013 = vmatpush.bf16.msra.mxu0 %v994
        %1014 = vmatpush.bf16.msra.mxu0 %v993
        %1015 = vmatpush.bf16.msra.mxu0 %v992
        %1016 = vmatmul.bf16.gmra.mxu0 %v952
        %v1017 = vpop.f32.mrf.mxu0
        %v1018 = vadd.f32 0.0, %v1017
        %v1019 = vpop.f32.mrf.mxu0
        %v1020 = vadd.f32 0.0, %v1019
        %1021 = vmatmul.bf16.gmra.mxu0 %v953
        %v1022 = vpop.f32.mrf.mxu0
        %v1023 = vadd.f32 0.0, %v1022
        %v1024 = vpop.f32.mrf.mxu0
        %v1025 = vadd.f32 0.0, %v1024
        %1026 = vmatmul.bf16.gmra.mxu0 %v954
        %v1027 = vpop.f32.mrf.mxu0
        %v1028 = vadd.f32 0.0, %v1027
        %v1029 = vpop.f32.mrf.mxu0
        %v1030 = vadd.f32 0.0, %v1029
        %1031 = vmatmul.bf16.gmra.mxu0 %v955
        %v1032 = vpop.f32.mrf.mxu0
        %v1033 = vadd.f32 0.0, %v1032
        %v1034 = vpop.f32.mrf.mxu0
        %v1035 = vadd.f32 0.0, %v1034
        %1036 = vmatmul.bf16.gmra.mxu0 %v956
        %v1037 = vpop.f32.mrf.mxu0
        %v1038 = vadd.f32 0.0, %v1037
        %v1039 = vpop.f32.mrf.mxu0
        %v1040 = vadd.f32 0.0, %v1039
        %1041 = vmatmul.bf16.gmra.mxu0 %v957
        %v1042 = vpop.f32.mrf.mxu0
        %v1043 = vadd.f32 0.0, %v1042
        %v1044 = vpop.f32.mrf.mxu0
        %v1045 = vadd.f32 0.0, %v1044
        %1046 = vmatmul.bf16.gmra.mxu0 %v958
        %v1047 = vpop.f32.mrf.mxu0
        %v1048 = vadd.f32 0.0, %v1047
        %v1049 = vpop.f32.mrf.mxu0
        %v1050 = vadd.f32 0.0, %v1049
        %1051 = vmatmul.bf16.gmra.mxu0 %v959
        %v1052 = vpop.f32.mrf.mxu0
        %v1053 = vadd.f32 0.0, %v1052
        %v1054 = vpop.f32.mrf.mxu0
        %v1055 = vadd.f32 0.0, %v1054
        %1056 = vdwg.mxu0
        %v1057 = vrcp.pop %v921
        %v1058 = vrcp.pop %v923
        %v1059 = vrcp.pop %v925
        %v1060 = vrcp.pop %v927
        %v1061 = vrcp.pop %v929
        %v1062 = vrcp.pop %v931
        %v1063 = vrcp.pop %v933
        %v1064 = vrcp.pop %v935
        %v1065 = vrcp.pop %v937
        %v1066 = vrcp.pop %v939
        %v1067 = vrcp.pop %v941
        %v1068 = vrcp.pop %v943
        %v1069 = vrcp.pop %v945
        %v1070 = vrcp.pop %v947
        %v1071 = vrcp.pop %v949
        %v1072 = vrcp.pop %v951
        %v1073 = vmul.f32 %v1018, %v1057
        %v1074 = vmul.f32 %v1020, %v1058
        %v1075 = vmul.f32 %v1023, %v1059
        %v1076 = vmul.f32 %v1025, %v1060
        %v1077 = vmul.f32 %v1028, %v1061
        %v1078 = vmul.f32 %v1030, %v1062
        %v1079 = vmul.f32 %v1033, %v1063
        %v1080 = vmul.f32 %v1035, %v1064
        %v1081 = vmul.f32 %v1038, %v1065
        %v1082 = vmul.f32 %v1040, %v1066
        %v1083 = vmul.f32 %v1043, %v1067
        %v1084 = vmul.f32 %v1045, %v1068
        %v1085 = vmul.f32 %v1048, %v1069
        %v1086 = vmul.f32 %v1050, %v1070
        %v1087 = vmul.f32 %v1053, %v1071
        %v1088 = vmul.f32 %v1055, %v1072
        %v1089 = vpack.c.bf16 %v1073, %v1073
        %v1090 = vpack.c.bf16 %v1074, %v1074
        %v1091 = vpack.c.bf16 %v1075, %v1075
        %v1092 = vpack.c.bf16 %v1076, %v1076
        %v1093 = vpack.c.bf16 %v1077, %v1077
        %v1094 = vpack.c.bf16 %v1078, %v1078
        %v1095 = vpack.c.bf16 %v1079, %v1079
        %v1096 = vpack.c.bf16 %v1080, %v1080
        %v1097 = vpack.c.bf16 %v1081, %v1081
        %v1098 = vpack.c.bf16 %v1082, %v1082
        %v1099 = vpack.c.bf16 %v1083, %v1083
        %v1100 = vpack.c.bf16 %v1084, %v1084
        %v1101 = vpack.c.bf16 %v1085, %v1085
        %v1102 = vpack.c.bf16 %v1086, %v1086
        %v1103 = vpack.c.bf16 %v1087, %v1087
        %v1104 = vpack.c.bf16 %v1088, %v1088
        %vm1105 = vcmask 257024
        %1106 = vst.msk [vmem:[#allocation2] sm:$0xf] %vm1105, %v1089
        %1107 = vst.msk [vmem:[#allocation2 + $0x4] sm:$0xf] %vm1105, %v1090
        %1108 = vst.msk [vmem:[#allocation2 + $0x8] sm:$0xf] %vm1105, %v1091
        %1109 = vst.msk [vmem:[#allocation2 + $0xc] sm:$0xf] %vm1105, %v1092
        %1110 = vst.msk [vmem:[#allocation2 + $0x10] sm:$0xf] %vm1105, %v1093
        %1111 = vst.msk [vmem:[#allocation2 + $0x14] sm:$0xf] %vm1105, %v1094
        %1112 = vst.msk [vmem:[#allocation2 + $0x18] sm:$0xf] %vm1105, %v1095
        %1113 = vst.msk [vmem:[#allocation2 + $0x1c] sm:$0xf] %vm1105, %v1096
        %1114 = vst.msk [vmem:[#allocation2 + $0x20] sm:$0xf] %vm1105, %v1097
        %1115 = vst.msk [vmem:[#allocation2 + $0x24] sm:$0xf] %vm1105, %v1098
        %1116 = vst.msk [vmem:[#allocation2 + $0x28] sm:$0xf] %vm1105, %v1099
        %1117 = vst.msk [vmem:[#allocation2 + $0x2c] sm:$0xf] %vm1105, %v1100
        %1118 = vst.msk [vmem:[#allocation2 + $0x30] sm:$0xf] %vm1105, %v1101
        %1119 = vst.msk [vmem:[#allocation2 + $0x34] sm:$0xf] %vm1105, %v1102
        %1120 = vst.msk [vmem:[#allocation2 + $0x38] sm:$0xf] %vm1105, %v1103
        %1121 = vst.msk [vmem:[#allocation2 + $0x3c] sm:$0xf] %vm1105, %v1104
        %1122 = vrot.lane.b32.xlu0 %v710, 96
        %v1123 = vpop.permute.xlu0 %1122
        %1124 = vrot.lane.b32.xlu0 %v711, 96
        %v1125 = vpop.permute.xlu0 %1124
        %1126 = vrot.lane.b32.xlu0 %v712, 96
        %v1127 = vpop.permute.xlu0 %1126
        %1128 = vrot.lane.b32.xlu0 %v713, 96
        %v1129 = vpop.permute.xlu0 %1128
        %1130 = vrot.lane.b32.xlu0 %v714, 96
        %v1131 = vpop.permute.xlu0 %1130
        %1132 = vrot.lane.b32.xlu0 %v715, 96
        %v1133 = vpop.permute.xlu0 %1132
        %1134 = vrot.lane.b32.xlu0 %v716, 96
        %v1135 = vpop.permute.xlu0 %1134
        %1136 = vrot.lane.b32.xlu0 %v717, 96
        %v1137 = vpop.permute.xlu0 %1136
        %1138 = vrot.lane.b32.xlu0 %v734, 96
        %v1139 = vpop.permute.xlu0 %1138
        %1140 = vrot.lane.b32.xlu0 %v735, 96
        %v1141 = vpop.permute.xlu0 %1140
        %1142 = vrot.lane.b32.xlu0 %v736, 96
        %v1143 = vpop.permute.xlu0 %1142
        %1144 = vrot.lane.b32.xlu0 %v737, 96
        %v1145 = vpop.permute.xlu0 %1144
        %1146 = vrot.lane.b32.xlu0 %v738, 96
        %v1147 = vpop.permute.xlu0 %1146
        %1148 = vrot.lane.b32.xlu0 %v739, 96
        %v1149 = vpop.permute.xlu0 %1148
        %1150 = vrot.lane.b32.xlu0 %v740, 96
        %v1151 = vpop.permute.xlu0 %1150
        %1152 = vrot.lane.b32.xlu0 %v741, 96
        %v1153 = vpop.permute.xlu0 %1152
        %v1155 = vsel %vm742, %v1123, 0
        %v1158 = vsel %vm742, %v1125, 0
        %v1161 = vsel %vm742, %v1127, 0
        %v1164 = vsel %vm742, %v1129, 0
        %v1167 = vsel %vm742, %v1131, 0
        %v1170 = vsel %vm742, %v1133, 0
        %v1173 = vsel %vm742, %v1135, 0
        %v1176 = vsel %vm742, %v1137, 0
        %v1179 = vsel %vm742, %v1139, 0
        %v1182 = vsel %vm742, %v1141, 0
        %v1185 = vsel %vm742, %v1143, 0
        %v1188 = vsel %vm742, %v1145, 0
        %v1191 = vsel %vm742, %v1147, 0
        %v1194 = vsel %vm742, %v1149, 0
        %v1197 = vsel %vm742, %v1151, 0
        %v1200 = vsel %vm742, %v1153, 0
        %1202 = vmatpush.bf16.xpose.msra.mxu0 %v1200
        %1203 = vmatpush.bf16.xpose.msra.mxu0 %v1197
        %1204 = vmatpush.bf16.xpose.msra.mxu0 %v1194
        %1205 = vmatpush.bf16.xpose.msra.mxu0 %v1191
        %1206 = vmatpush.bf16.xpose.msra.mxu0 %v1188
        %1207 = vmatpush.bf16.xpose.msra.mxu0 %v1185
        %1208 = vmatpush.bf16.xpose.msra.mxu0 %v1182
        %1209 = vmatpush.bf16.xpose.msra.mxu0 %v1179
        %1210 = vmatmul.bf16.gmra.mxu0 %v1155
        %v1211 = vpop.f32.mrf.mxu0
        %v1212 = vadd.f32 0.0, %v1211
        %v1213 = vpop.f32.mrf.mxu0
        %v1214 = vadd.f32 0.0, %v1213
        %1215 = vmatmul.bf16.gmra.mxu0 %v1158
        %v1216 = vpop.f32.mrf.mxu0
        %v1217 = vadd.f32 0.0, %v1216
        %v1218 = vpop.f32.mrf.mxu0
        %v1219 = vadd.f32 0.0, %v1218
        %1220 = vmatmul.bf16.gmra.mxu0 %v1161
        %v1221 = vpop.f32.mrf.mxu0
        %v1222 = vadd.f32 0.0, %v1221
        %v1223 = vpop.f32.mrf.mxu0
        %v1224 = vadd.f32 0.0, %v1223
        %1225 = vmatmul.bf16.gmra.mxu0 %v1164
        %v1226 = vpop.f32.mrf.mxu0
        %v1227 = vadd.f32 0.0, %v1226
        %v1228 = vpop.f32.mrf.mxu0
        %v1229 = vadd.f32 0.0, %v1228
        %1230 = vmatmul.bf16.gmra.mxu0 %v1167
        %v1231 = vpop.f32.mrf.mxu0
        %v1232 = vadd.f32 0.0, %v1231
        %v1233 = vpop.f32.mrf.mxu0
        %v1234 = vadd.f32 0.0, %v1233
        %1235 = vmatmul.bf16.gmra.mxu0 %v1170
        %v1236 = vpop.f32.mrf.mxu0
        %v1237 = vadd.f32 0.0, %v1236
        %v1238 = vpop.f32.mrf.mxu0
        %v1239 = vadd.f32 0.0, %v1238
        %1240 = vmatmul.bf16.gmra.mxu0 %v1173
        %v1241 = vpop.f32.mrf.mxu0
        %v1242 = vadd.f32 0.0, %v1241
        %v1243 = vpop.f32.mrf.mxu0
        %v1244 = vadd.f32 0.0, %v1243
        %1245 = vmatmul.bf16.gmra.mxu0 %v1176
        %v1246 = vpop.f32.mrf.mxu0
        %v1247 = vadd.f32 0.0, %v1246
        %v1248 = vpop.f32.mrf.mxu0
        %v1249 = vadd.f32 0.0, %v1248
        %1250 = vdwg.mxu0
        %1251 = vmax.xlane.f32.xlu0 %v1212
        %v1252 = vpop.xlane.xlu0 %1251
        %1253 = vmax.xlane.f32.xlu0 %v1214
        %v1254 = vpop.xlane.xlu0 %1253
        %1255 = vmax.xlane.f32.xlu0 %v1217
        %v1256 = vpop.xlane.xlu0 %1255
        %1257 = vmax.xlane.f32.xlu0 %v1219
        %v1258 = vpop.xlane.xlu0 %1257
        %1259 = vmax.xlane.f32.xlu0 %v1222
        %v1260 = vpop.xlane.xlu0 %1259
        %1261 = vmax.xlane.f32.xlu0 %v1224
        %v1262 = vpop.xlane.xlu0 %1261
        %1263 = vmax.xlane.f32.xlu0 %v1227
        %v1264 = vpop.xlane.xlu0 %1263
        %1265 = vmax.xlane.f32.xlu0 %v1229
        %v1266 = vpop.xlane.xlu0 %1265
        %1267 = vmax.xlane.f32.xlu0 %v1232
        %v1268 = vpop.xlane.xlu0 %1267
        %1269 = vmax.xlane.f32.xlu0 %v1234
        %v1270 = vpop.xlane.xlu0 %1269
        %1271 = vmax.xlane.f32.xlu0 %v1237
        %v1272 = vpop.xlane.xlu0 %1271
        %1273 = vmax.xlane.f32.xlu0 %v1239
        %v1274 = vpop.xlane.xlu0 %1273
        %1275 = vmax.xlane.f32.xlu0 %v1242
        %v1276 = vpop.xlane.xlu0 %1275
        %1277 = vmax.xlane.f32.xlu0 %v1244
        %v1278 = vpop.xlane.xlu0 %1277
        %1279 = vmax.xlane.f32.xlu0 %v1247
        %v1280 = vpop.xlane.xlu0 %1279
        %1281 = vmax.xlane.f32.xlu0 %v1249
        %v1282 = vpop.xlane.xlu0 %1281
        %v1283 = vsub.f32 %v1212, %v1252
        %v1284 = vsub.f32 %v1214, %v1254
        %v1285 = vsub.f32 %v1217, %v1256
        %v1286 = vsub.f32 %v1219, %v1258
        %v1287 = vsub.f32 %v1222, %v1260
        %v1288 = vsub.f32 %v1224, %v1262
        %v1289 = vsub.f32 %v1227, %v1264
        %v1290 = vsub.f32 %v1229, %v1266
        %v1291 = vsub.f32 %v1232, %v1268
        %v1292 = vsub.f32 %v1234, %v1270
        %v1293 = vsub.f32 %v1237, %v1272
        %v1294 = vsub.f32 %v1239, %v1274
        %v1295 = vsub.f32 %v1242, %v1276
        %v1296 = vsub.f32 %v1244, %v1278
        %v1297 = vsub.f32 %v1247, %v1280
        %v1298 = vsub.f32 %v1249, %v1282
        %v1299 = vmul.f32 %v1283, 1.442695
        %v1300 = vpow.pop %v1299
        %v1301 = vmul.f32 %v1284, 1.442695
        %v1302 = vpow.pop %v1301
        %v1303 = vmul.f32 %v1285, 1.442695
        %v1304 = vpow.pop %v1303
        %v1305 = vmul.f32 %v1286, 1.442695
        %v1306 = vpow.pop %v1305
        %v1307 = vmul.f32 %v1287, 1.442695
        %v1308 = vpow.pop %v1307
        %v1309 = vmul.f32 %v1288, 1.442695
        %v1310 = vpow.pop %v1309
        %v1311 = vmul.f32 %v1289, 1.442695
        %v1312 = vpow.pop %v1311
        %v1313 = vmul.f32 %v1290, 1.442695
        %v1314 = vpow.pop %v1313
        %v1315 = vmul.f32 %v1291, 1.442695
        %v1316 = vpow.pop %v1315
        %v1317 = vmul.f32 %v1292, 1.442695
        %v1318 = vpow.pop %v1317
        %v1319 = vmul.f32 %v1293, 1.442695
        %v1320 = vpow.pop %v1319
        %v1321 = vmul.f32 %v1294, 1.442695
        %v1322 = vpow.pop %v1321
        %v1323 = vmul.f32 %v1295, 1.442695
        %v1324 = vpow.pop %v1323
        %v1325 = vmul.f32 %v1296, 1.442695
        %v1326 = vpow.pop %v1325
        %v1327 = vmul.f32 %v1297, 1.442695
        %v1328 = vpow.pop %v1327
        %v1329 = vmul.f32 %v1298, 1.442695
        %v1330 = vpow.pop %v1329
        %1331 = vadd.xlane.f32.xlu0 %v1300
        %v1332 = vpop.xlane.xlu0 %1331
        %1333 = vadd.xlane.f32.xlu0 %v1302
        %v1334 = vpop.xlane.xlu0 %1333
        %1335 = vadd.xlane.f32.xlu0 %v1304
        %v1336 = vpop.xlane.xlu0 %1335
        %1337 = vadd.xlane.f32.xlu0 %v1306
        %v1338 = vpop.xlane.xlu0 %1337
        %1339 = vadd.xlane.f32.xlu0 %v1308
        %v1340 = vpop.xlane.xlu0 %1339
        %1341 = vadd.xlane.f32.xlu0 %v1310
        %v1342 = vpop.xlane.xlu0 %1341
        %1343 = vadd.xlane.f32.xlu0 %v1312
        %v1344 = vpop.xlane.xlu0 %1343
        %1345 = vadd.xlane.f32.xlu0 %v1314
        %v1346 = vpop.xlane.xlu0 %1345
        %1347 = vadd.xlane.f32.xlu0 %v1316
        %v1348 = vpop.xlane.xlu0 %1347
        %1349 = vadd.xlane.f32.xlu0 %v1318
        %v1350 = vpop.xlane.xlu0 %1349
        %1351 = vadd.xlane.f32.xlu0 %v1320
        %v1352 = vpop.xlane.xlu0 %1351
        %1353 = vadd.xlane.f32.xlu0 %v1322
        %v1354 = vpop.xlane.xlu0 %1353
        %1355 = vadd.xlane.f32.xlu0 %v1324
        %v1356 = vpop.xlane.xlu0 %1355
        %1357 = vadd.xlane.f32.xlu0 %v1326
        %v1358 = vpop.xlane.xlu0 %1357
        %1359 = vadd.xlane.f32.xlu0 %v1328
        %v1360 = vpop.xlane.xlu0 %1359
        %1361 = vadd.xlane.f32.xlu0 %v1330
        %v1362 = vpop.xlane.xlu0 %1361
        %v1363 = vpack.c.bf16 %v1302, %v1300
        %v1364 = vpack.c.bf16 %v1306, %v1304
        %v1365 = vpack.c.bf16 %v1310, %v1308
        %v1366 = vpack.c.bf16 %v1314, %v1312
        %v1367 = vpack.c.bf16 %v1318, %v1316
        %v1368 = vpack.c.bf16 %v1322, %v1320
        %v1369 = vpack.c.bf16 %v1326, %v1324
        %v1370 = vpack.c.bf16 %v1330, %v1328
        %1371 = vrot.lane.b32.xlu0 %v992, 96
        %v1372 = vpop.permute.xlu0 %1371
        %1373 = vrot.lane.b32.xlu0 %v993, 96
        %v1374 = vpop.permute.xlu0 %1373
        %1375 = vrot.lane.b32.xlu0 %v994, 96
        %v1376 = vpop.permute.xlu0 %1375
        %1377 = vrot.lane.b32.xlu0 %v995, 96
        %v1378 = vpop.permute.xlu0 %1377
        %1379 = vrot.lane.b32.xlu0 %v996, 96
        %v1380 = vpop.permute.xlu0 %1379
        %1381 = vrot.lane.b32.xlu0 %v997, 96
        %v1382 = vpop.permute.xlu0 %1381
        %1383 = vrot.lane.b32.xlu0 %v998, 96
        %v1384 = vpop.permute.xlu0 %1383
        %1385 = vrot.lane.b32.xlu0 %v999, 96
        %v1386 = vpop.permute.xlu0 %1385
        %1395 = vmatpush.bf16.msra.mxu0 %v1386
        %1396 = vmatpush.bf16.msra.mxu0 %v1384
        %1397 = vmatpush.bf16.msra.mxu0 %v1382
        %1398 = vmatpush.bf16.msra.mxu0 %v1380
        %1399 = vmatpush.bf16.msra.mxu0 %v1378
        %1400 = vmatpush.bf16.msra.mxu0 %v1376
        %1401 = vmatpush.bf16.msra.mxu0 %v1374
        %1402 = vmatpush.bf16.msra.mxu0 %v1372
        %1403 = vmatmul.bf16.gmra.mxu0 %v1363
        %v1404 = vpop.f32.mrf.mxu0
        %v1405 = vadd.f32 0.0, %v1404
        %v1406 = vpop.f32.mrf.mxu0
        %v1407 = vadd.f32 0.0, %v1406
        %1408 = vmatmul.bf16.gmra.mxu0 %v1364
        %v1409 = vpop.f32.mrf.mxu0
        %v1410 = vadd.f32 0.0, %v1409
        %v1411 = vpop.f32.mrf.mxu0
        %v1412 = vadd.f32 0.0, %v1411
        %1413 = vmatmul.bf16.gmra.mxu0 %v1365
        %v1414 = vpop.f32.mrf.mxu0
        %v1415 = vadd.f32 0.0, %v1414
        %v1416 = vpop.f32.mrf.mxu0
        %v1417 = vadd.f32 0.0, %v1416
        %1418 = vmatmul.bf16.gmra.mxu0 %v1366
        %v1419 = vpop.f32.mrf.mxu0
        %v1420 = vadd.f32 0.0, %v1419
        %v1421 = vpop.f32.mrf.mxu0
        %v1422 = vadd.f32 0.0, %v1421
        %1423 = vmatmul.bf16.gmra.mxu0 %v1367
        %v1424 = vpop.f32.mrf.mxu0
        %v1425 = vadd.f32 0.0, %v1424
        %v1426 = vpop.f32.mrf.mxu0
        %v1427 = vadd.f32 0.0, %v1426
        %1428 = vmatmul.bf16.gmra.mxu0 %v1368
        %v1429 = vpop.f32.mrf.mxu0
        %v1430 = vadd.f32 0.0, %v1429
        %v1431 = vpop.f32.mrf.mxu0
        %v1432 = vadd.f32 0.0, %v1431
        %1433 = vmatmul.bf16.gmra.mxu0 %v1369
        %v1434 = vpop.f32.mrf.mxu0
        %v1435 = vadd.f32 0.0, %v1434
        %v1436 = vpop.f32.mrf.mxu0
        %v1437 = vadd.f32 0.0, %v1436
        %1438 = vmatmul.bf16.gmra.mxu0 %v1370
        %v1439 = vpop.f32.mrf.mxu0
        %v1440 = vadd.f32 0.0, %v1439
        %v1441 = vpop.f32.mrf.mxu0
        %v1442 = vadd.f32 0.0, %v1441
        %1443 = vdwg.mxu0
        %v1444 = vrcp.pop %v1332
        %v1445 = vrcp.pop %v1334
        %v1446 = vrcp.pop %v1336
        %v1447 = vrcp.pop %v1338
        %v1448 = vrcp.pop %v1340
        %v1449 = vrcp.pop %v1342
        %v1450 = vrcp.pop %v1344
        %v1451 = vrcp.pop %v1346
        %v1452 = vrcp.pop %v1348
        %v1453 = vrcp.pop %v1350
        %v1454 = vrcp.pop %v1352
        %v1455 = vrcp.pop %v1354
        %v1456 = vrcp.pop %v1356
        %v1457 = vrcp.pop %v1358
        %v1458 = vrcp.pop %v1360
        %v1459 = vrcp.pop %v1362
        %v1460 = vmul.f32 %v1405, %v1444
        %v1461 = vmul.f32 %v1407, %v1445
        %v1462 = vmul.f32 %v1410, %v1446
        %v1463 = vmul.f32 %v1412, %v1447
        %v1464 = vmul.f32 %v1415, %v1448
        %v1465 = vmul.f32 %v1417, %v1449
        %v1466 = vmul.f32 %v1420, %v1450
        %v1467 = vmul.f32 %v1422, %v1451
        %v1468 = vmul.f32 %v1425, %v1452
        %v1469 = vmul.f32 %v1427, %v1453
        %v1470 = vmul.f32 %v1430, %v1454
        %v1471 = vmul.f32 %v1432, %v1455
        %v1472 = vmul.f32 %v1435, %v1456
        %v1473 = vmul.f32 %v1437, %v1457
        %v1474 = vmul.f32 %v1440, %v1458
        %v1475 = vmul.f32 %v1442, %v1459
        %v1476 = vpack.c.bf16 %v1460, %v1460
        %v1477 = vpack.c.bf16 %v1461, %v1461
        %v1478 = vpack.c.bf16 %v1462, %v1462
        %v1479 = vpack.c.bf16 %v1463, %v1463
        %v1480 = vpack.c.bf16 %v1464, %v1464
        %v1481 = vpack.c.bf16 %v1465, %v1465
        %v1482 = vpack.c.bf16 %v1466, %v1466
        %v1483 = vpack.c.bf16 %v1467, %v1467
        %v1484 = vpack.c.bf16 %v1468, %v1468
        %v1485 = vpack.c.bf16 %v1469, %v1469
        %v1486 = vpack.c.bf16 %v1470, %v1470
        %v1487 = vpack.c.bf16 %v1471, %v1471
        %v1488 = vpack.c.bf16 %v1472, %v1472
        %v1489 = vpack.c.bf16 %v1473, %v1473
        %v1490 = vpack.c.bf16 %v1474, %v1474
        %v1491 = vpack.c.bf16 %v1475, %v1475
        %1508 = vrot.lane.b32.xlu0 %v1476, 32
        %v1509 = vpop.permute.xlu0 %1508
        %1510 = vrot.lane.b32.xlu0 %v1477, 32
        %v1511 = vpop.permute.xlu0 %1510
        %1512 = vrot.lane.b32.xlu0 %v1478, 32
        %v1513 = vpop.permute.xlu0 %1512
        %1514 = vrot.lane.b32.xlu0 %v1479, 32
        %v1515 = vpop.permute.xlu0 %1514
        %1516 = vrot.lane.b32.xlu0 %v1480, 32
        %v1517 = vpop.permute.xlu0 %1516
        %1518 = vrot.lane.b32.xlu0 %v1481, 32
        %v1519 = vpop.permute.xlu0 %1518
        %1520 = vrot.lane.b32.xlu0 %v1482, 32
        %v1521 = vpop.permute.xlu0 %1520
        %1522 = vrot.lane.b32.xlu0 %v1483, 32
        %v1523 = vpop.permute.xlu0 %1522
        %1524 = vrot.lane.b32.xlu0 %v1484, 32
        %v1525 = vpop.permute.xlu0 %1524
        %1526 = vrot.lane.b32.xlu0 %v1485, 32
        %v1527 = vpop.permute.xlu0 %1526
        %1528 = vrot.lane.b32.xlu0 %v1486, 32
        %v1529 = vpop.permute.xlu0 %1528
        %1530 = vrot.lane.b32.xlu0 %v1487, 32
        %v1531 = vpop.permute.xlu0 %1530
        %1532 = vrot.lane.b32.xlu0 %v1488, 32
        %v1533 = vpop.permute.xlu0 %1532
        %1534 = vrot.lane.b32.xlu0 %v1489, 32
        %v1535 = vpop.permute.xlu0 %1534
        %1536 = vrot.lane.b32.xlu0 %v1490, 32
        %v1537 = vpop.permute.xlu0 %1536
        %1538 = vrot.lane.b32.xlu0 %v1491, 32
        %v1539 = vpop.permute.xlu0 %1538
        %vm1556 = vcmask 519424
        %1557 = vst.msk [vmem:[#allocation2] sm:$0xf] %vm1556, %v1509
        %1558 = vst.msk [vmem:[#allocation2 + $0x4] sm:$0xf] %vm1556, %v1511
        %1559 = vst.msk [vmem:[#allocation2 + $0x8] sm:$0xf] %vm1556, %v1513
        %1560 = vst.msk [vmem:[#allocation2 + $0xc] sm:$0xf] %vm1556, %v1515
        %1561 = vst.msk [vmem:[#allocation2 + $0x10] sm:$0xf] %vm1556, %v1517
        %1562 = vst.msk [vmem:[#allocation2 + $0x14] sm:$0xf] %vm1556, %v1519
        %1563 = vst.msk [vmem:[#allocation2 + $0x18] sm:$0xf] %vm1556, %v1521
        %1564 = vst.msk [vmem:[#allocation2 + $0x1c] sm:$0xf] %vm1556, %v1523
        %1565 = vst.msk [vmem:[#allocation2 + $0x20] sm:$0xf] %vm1556, %v1525
        %1566 = vst.msk [vmem:[#allocation2 + $0x24] sm:$0xf] %vm1556, %v1527
        %1567 = vst.msk [vmem:[#allocation2 + $0x28] sm:$0xf] %vm1556, %v1529
        %1568 = vst.msk [vmem:[#allocation2 + $0x2c] sm:$0xf] %vm1556, %v1531
        %1569 = vst.msk [vmem:[#allocation2 + $0x30] sm:$0xf] %vm1556, %v1533
        %1570 = vst.msk [vmem:[#allocation2 + $0x34] sm:$0xf] %vm1556, %v1535
        %1571 = vst.msk [vmem:[#allocation2 + $0x38] sm:$0xf] %vm1556, %v1537
        %1572 = vst.msk [vmem:[#allocation2 + $0x3c] sm:$0xf] %vm1556, %v1539
        %1573 = vrot.lane.b32.xlu0 %v710, 64
        %v1574 = vpop.permute.xlu0 %1573
        %1575 = vrot.lane.b32.xlu0 %v711, 64
        %v1576 = vpop.permute.xlu0 %1575
        %1577 = vrot.lane.b32.xlu0 %v712, 64
        %v1578 = vpop.permute.xlu0 %1577
        %1579 = vrot.lane.b32.xlu0 %v713, 64
        %v1580 = vpop.permute.xlu0 %1579
        %1581 = vrot.lane.b32.xlu0 %v714, 64
        %v1582 = vpop.permute.xlu0 %1581
        %1583 = vrot.lane.b32.xlu0 %v715, 64
        %v1584 = vpop.permute.xlu0 %1583
        %1585 = vrot.lane.b32.xlu0 %v716, 64
        %v1586 = vpop.permute.xlu0 %1585
        %1587 = vrot.lane.b32.xlu0 %v717, 64
        %v1588 = vpop.permute.xlu0 %1587
        %1589 = vrot.lane.b32.xlu0 %v734, 64
        %v1590 = vpop.permute.xlu0 %1589
        %1591 = vrot.lane.b32.xlu0 %v735, 64
        %v1592 = vpop.permute.xlu0 %1591
        %1593 = vrot.lane.b32.xlu0 %v736, 64
        %v1594 = vpop.permute.xlu0 %1593
        %1595 = vrot.lane.b32.xlu0 %v737, 64
        %v1596 = vpop.permute.xlu0 %1595
        %1597 = vrot.lane.b32.xlu0 %v738, 64
        %v1598 = vpop.permute.xlu0 %1597
        %1599 = vrot.lane.b32.xlu0 %v739, 64
        %v1600 = vpop.permute.xlu0 %1599
        %1601 = vrot.lane.b32.xlu0 %v740, 64
        %v1602 = vpop.permute.xlu0 %1601
        %1603 = vrot.lane.b32.xlu0 %v741, 64
        %v1604 = vpop.permute.xlu0 %1603
        %v1606 = vsel %vm742, %v1574, 0
        %v1609 = vsel %vm742, %v1576, 0
        %v1612 = vsel %vm742, %v1578, 0
        %v1615 = vsel %vm742, %v1580, 0
        %v1618 = vsel %vm742, %v1582, 0
        %v1621 = vsel %vm742, %v1584, 0
        %v1624 = vsel %vm742, %v1586, 0
        %v1627 = vsel %vm742, %v1588, 0
        %v1630 = vsel %vm742, %v1590, 0
        %v1633 = vsel %vm742, %v1592, 0
        %v1636 = vsel %vm742, %v1594, 0
        %v1639 = vsel %vm742, %v1596, 0
        %v1642 = vsel %vm742, %v1598, 0
        %v1645 = vsel %vm742, %v1600, 0
        %v1648 = vsel %vm742, %v1602, 0
        %v1651 = vsel %vm742, %v1604, 0
        %1653 = vmatpush.bf16.xpose.msra.mxu0 %v1651
        %1654 = vmatpush.bf16.xpose.msra.mxu0 %v1648
        %1655 = vmatpush.bf16.xpose.msra.mxu0 %v1645
        %1656 = vmatpush.bf16.xpose.msra.mxu0 %v1642
        %1657 = vmatpush.bf16.xpose.msra.mxu0 %v1639
        %1658 = vmatpush.bf16.xpose.msra.mxu0 %v1636
        %1659 = vmatpush.bf16.xpose.msra.mxu0 %v1633
        %1660 = vmatpush.bf16.xpose.msra.mxu0 %v1630
        %1661 = vmatmul.bf16.gmra.mxu0 %v1606
        %v1662 = vpop.f32.mrf.mxu0
        %v1663 = vadd.f32 0.0, %v1662
        %v1664 = vpop.f32.mrf.mxu0
        %v1665 = vadd.f32 0.0, %v1664
        %1666 = vmatmul.bf16.gmra.mxu0 %v1609
        %v1667 = vpop.f32.mrf.mxu0
        %v1668 = vadd.f32 0.0, %v1667
        %v1669 = vpop.f32.mrf.mxu0
        %v1670 = vadd.f32 0.0, %v1669
        %1671 = vmatmul.bf16.gmra.mxu0 %v1612
        %v1672 = vpop.f32.mrf.mxu0
        %v1673 = vadd.f32 0.0, %v1672
        %v1674 = vpop.f32.mrf.mxu0
        %v1675 = vadd.f32 0.0, %v1674
        %1676 = vmatmul.bf16.gmra.mxu0 %v1615
        %v1677 = vpop.f32.mrf.mxu0
        %v1678 = vadd.f32 0.0, %v1677
        %v1679 = vpop.f32.mrf.mxu0
        %v1680 = vadd.f32 0.0, %v1679
        %1681 = vmatmul.bf16.gmra.mxu0 %v1618
        %v1682 = vpop.f32.mrf.mxu0
        %v1683 = vadd.f32 0.0, %v1682
        %v1684 = vpop.f32.mrf.mxu0
        %v1685 = vadd.f32 0.0, %v1684
        %1686 = vmatmul.bf16.gmra.mxu0 %v1621
        %v1687 = vpop.f32.mrf.mxu0
        %v1688 = vadd.f32 0.0, %v1687
        %v1689 = vpop.f32.mrf.mxu0
        %v1690 = vadd.f32 0.0, %v1689
        %1691 = vmatmul.bf16.gmra.mxu0 %v1624
        %v1692 = vpop.f32.mrf.mxu0
        %v1693 = vadd.f32 0.0, %v1692
        %v1694 = vpop.f32.mrf.mxu0
        %v1695 = vadd.f32 0.0, %v1694
        %1696 = vmatmul.bf16.gmra.mxu0 %v1627
        %v1697 = vpop.f32.mrf.mxu0
        %v1698 = vadd.f32 0.0, %v1697
        %v1699 = vpop.f32.mrf.mxu0
        %v1700 = vadd.f32 0.0, %v1699
        %1701 = vdwg.mxu0
        %1702 = vmax.xlane.f32.xlu0 %v1663
        %v1703 = vpop.xlane.xlu0 %1702
        %1704 = vmax.xlane.f32.xlu0 %v1665
        %v1705 = vpop.xlane.xlu0 %1704
        %1706 = vmax.xlane.f32.xlu0 %v1668
        %v1707 = vpop.xlane.xlu0 %1706
        %1708 = vmax.xlane.f32.xlu0 %v1670
        %v1709 = vpop.xlane.xlu0 %1708
        %1710 = vmax.xlane.f32.xlu0 %v1673
        %v1711 = vpop.xlane.xlu0 %1710
        %1712 = vmax.xlane.f32.xlu0 %v1675
        %v1713 = vpop.xlane.xlu0 %1712
        %1714 = vmax.xlane.f32.xlu0 %v1678
        %v1715 = vpop.xlane.xlu0 %1714
        %1716 = vmax.xlane.f32.xlu0 %v1680
        %v1717 = vpop.xlane.xlu0 %1716
        %1718 = vmax.xlane.f32.xlu0 %v1683
        %v1719 = vpop.xlane.xlu0 %1718
        %1720 = vmax.xlane.f32.xlu0 %v1685
        %v1721 = vpop.xlane.xlu0 %1720
        %1722 = vmax.xlane.f32.xlu0 %v1688
        %v1723 = vpop.xlane.xlu0 %1722
        %1724 = vmax.xlane.f32.xlu0 %v1690
        %v1725 = vpop.xlane.xlu0 %1724
        %1726 = vmax.xlane.f32.xlu0 %v1693
        %v1727 = vpop.xlane.xlu0 %1726
        %1728 = vmax.xlane.f32.xlu0 %v1695
        %v1729 = vpop.xlane.xlu0 %1728
        %1730 = vmax.xlane.f32.xlu0 %v1698
        %v1731 = vpop.xlane.xlu0 %1730
        %1732 = vmax.xlane.f32.xlu0 %v1700
        %v1733 = vpop.xlane.xlu0 %1732
        %v1734 = vsub.f32 %v1663, %v1703
        %v1735 = vsub.f32 %v1665, %v1705
        %v1736 = vsub.f32 %v1668, %v1707
        %v1737 = vsub.f32 %v1670, %v1709
        %v1738 = vsub.f32 %v1673, %v1711
        %v1739 = vsub.f32 %v1675, %v1713
        %v1740 = vsub.f32 %v1678, %v1715
        %v1741 = vsub.f32 %v1680, %v1717
        %v1742 = vsub.f32 %v1683, %v1719
        %v1743 = vsub.f32 %v1685, %v1721
        %v1744 = vsub.f32 %v1688, %v1723
        %v1745 = vsub.f32 %v1690, %v1725
        %v1746 = vsub.f32 %v1693, %v1727
        %v1747 = vsub.f32 %v1695, %v1729
        %v1748 = vsub.f32 %v1698, %v1731
        %v1749 = vsub.f32 %v1700, %v1733
        %v1750 = vmul.f32 %v1734, 1.442695
        %v1751 = vpow.pop %v1750
        %v1752 = vmul.f32 %v1735, 1.442695
        %v1753 = vpow.pop %v1752
        %v1754 = vmul.f32 %v1736, 1.442695
        %v1755 = vpow.pop %v1754
        %v1756 = vmul.f32 %v1737, 1.442695
        %v1757 = vpow.pop %v1756
        %v1758 = vmul.f32 %v1738, 1.442695
        %v1759 = vpow.pop %v1758
        %v1760 = vmul.f32 %v1739, 1.442695
        %v1761 = vpow.pop %v1760
        %v1762 = vmul.f32 %v1740, 1.442695
        %v1763 = vpow.pop %v1762
        %v1764 = vmul.f32 %v1741, 1.442695
        %v1765 = vpow.pop %v1764
        %v1766 = vmul.f32 %v1742, 1.442695
        %v1767 = vpow.pop %v1766
        %v1768 = vmul.f32 %v1743, 1.442695
        %v1769 = vpow.pop %v1768
        %v1770 = vmul.f32 %v1744, 1.442695
        %v1771 = vpow.pop %v1770
        %v1772 = vmul.f32 %v1745, 1.442695
        %v1773 = vpow.pop %v1772
        %v1774 = vmul.f32 %v1746, 1.442695
        %v1775 = vpow.pop %v1774
        %v1776 = vmul.f32 %v1747, 1.442695
        %v1777 = vpow.pop %v1776
        %v1778 = vmul.f32 %v1748, 1.442695
        %v1779 = vpow.pop %v1778
        %v1780 = vmul.f32 %v1749, 1.442695
        %v1781 = vpow.pop %v1780
        %1782 = vadd.xlane.f32.xlu0 %v1751
        %v1783 = vpop.xlane.xlu0 %1782
        %1784 = vadd.xlane.f32.xlu0 %v1753
        %v1785 = vpop.xlane.xlu0 %1784
        %1786 = vadd.xlane.f32.xlu0 %v1755
        %v1787 = vpop.xlane.xlu0 %1786
        %1788 = vadd.xlane.f32.xlu0 %v1757
        %v1789 = vpop.xlane.xlu0 %1788
        %1790 = vadd.xlane.f32.xlu0 %v1759
        %v1791 = vpop.xlane.xlu0 %1790
        %1792 = vadd.xlane.f32.xlu0 %v1761
        %v1793 = vpop.xlane.xlu0 %1792
        %1794 = vadd.xlane.f32.xlu0 %v1763
        %v1795 = vpop.xlane.xlu0 %1794
        %1796 = vadd.xlane.f32.xlu0 %v1765
        %v1797 = vpop.xlane.xlu0 %1796
        %1798 = vadd.xlane.f32.xlu0 %v1767
        %v1799 = vpop.xlane.xlu0 %1798
        %1800 = vadd.xlane.f32.xlu0 %v1769
        %v1801 = vpop.xlane.xlu0 %1800
        %1802 = vadd.xlane.f32.xlu0 %v1771
        %v1803 = vpop.xlane.xlu0 %1802
        %1804 = vadd.xlane.f32.xlu0 %v1773
        %v1805 = vpop.xlane.xlu0 %1804
        %1806 = vadd.xlane.f32.xlu0 %v1775
        %v1807 = vpop.xlane.xlu0 %1806
        %1808 = vadd.xlane.f32.xlu0 %v1777
        %v1809 = vpop.xlane.xlu0 %1808
        %1810 = vadd.xlane.f32.xlu0 %v1779
        %v1811 = vpop.xlane.xlu0 %1810
        %1812 = vadd.xlane.f32.xlu0 %v1781
        %v1813 = vpop.xlane.xlu0 %1812
        %v1814 = vpack.c.bf16 %v1753, %v1751
        %v1815 = vpack.c.bf16 %v1757, %v1755
        %v1816 = vpack.c.bf16 %v1761, %v1759
        %v1817 = vpack.c.bf16 %v1765, %v1763
        %v1818 = vpack.c.bf16 %v1769, %v1767
        %v1819 = vpack.c.bf16 %v1773, %v1771
        %v1820 = vpack.c.bf16 %v1777, %v1775
        %v1821 = vpack.c.bf16 %v1781, %v1779
        %1822 = vrot.lane.b32.xlu0 %v992, 64
        %v1823 = vpop.permute.xlu0 %1822
        %1824 = vrot.lane.b32.xlu0 %v993, 64
        %v1825 = vpop.permute.xlu0 %1824
        %1826 = vrot.lane.b32.xlu0 %v994, 64
        %v1827 = vpop.permute.xlu0 %1826
        %1828 = vrot.lane.b32.xlu0 %v995, 64
        %v1829 = vpop.permute.xlu0 %1828
        %1830 = vrot.lane.b32.xlu0 %v996, 64
        %v1831 = vpop.permute.xlu0 %1830
        %1832 = vrot.lane.b32.xlu0 %v997, 64
        %v1833 = vpop.permute.xlu0 %1832
        %1834 = vrot.lane.b32.xlu0 %v998, 64
        %v1835 = vpop.permute.xlu0 %1834
        %1836 = vrot.lane.b32.xlu0 %v999, 64
        %v1837 = vpop.permute.xlu0 %1836
        %1846 = vmatpush.bf16.msra.mxu0 %v1837
        %1847 = vmatpush.bf16.msra.mxu0 %v1835
        %1848 = vmatpush.bf16.msra.mxu0 %v1833
        %1849 = vmatpush.bf16.msra.mxu0 %v1831
        %1850 = vmatpush.bf16.msra.mxu0 %v1829
        %1851 = vmatpush.bf16.msra.mxu0 %v1827
        %1852 = vmatpush.bf16.msra.mxu0 %v1825
        %1853 = vmatpush.bf16.msra.mxu0 %v1823
        %1854 = vmatmul.bf16.gmra.mxu0 %v1814
        %v1855 = vpop.f32.mrf.mxu0
        %v1856 = vadd.f32 0.0, %v1855
        %v1857 = vpop.f32.mrf.mxu0
        %v1858 = vadd.f32 0.0, %v1857
        %1859 = vmatmul.bf16.gmra.mxu0 %v1815
        %v1860 = vpop.f32.mrf.mxu0
        %v1861 = vadd.f32 0.0, %v1860
        %v1862 = vpop.f32.mrf.mxu0
        %v1863 = vadd.f32 0.0, %v1862
        %1864 = vmatmul.bf16.gmra.mxu0 %v1816
        %v1865 = vpop.f32.mrf.mxu0
        %v1866 = vadd.f32 0.0, %v1865
        %v1867 = vpop.f32.mrf.mxu0
        %v1868 = vadd.f32 0.0, %v1867
        %1869 = vmatmul.bf16.gmra.mxu0 %v1817
        %v1870 = vpop.f32.mrf.mxu0
        %v1871 = vadd.f32 0.0, %v1870
        %v1872 = vpop.f32.mrf.mxu0
        %v1873 = vadd.f32 0.0, %v1872
        %1874 = vmatmul.bf16.gmra.mxu0 %v1818
        %v1875 = vpop.f32.mrf.mxu0
        %v1876 = vadd.f32 0.0, %v1875
        %v1877 = vpop.f32.mrf.mxu0
        %v1878 = vadd.f32 0.0, %v1877
        %1879 = vmatmul.bf16.gmra.mxu0 %v1819
        %v1880 = vpop.f32.mrf.mxu0
        %v1881 = vadd.f32 0.0, %v1880
        %v1882 = vpop.f32.mrf.mxu0
        %v1883 = vadd.f32 0.0, %v1882
        %1884 = vmatmul.bf16.gmra.mxu0 %v1820
        %v1885 = vpop.f32.mrf.mxu0
        %v1886 = vadd.f32 0.0, %v1885
        %v1887 = vpop.f32.mrf.mxu0
        %v1888 = vadd.f32 0.0, %v1887
        %1889 = vmatmul.bf16.gmra.mxu0 %v1821
        %v1890 = vpop.f32.mrf.mxu0
        %v1891 = vadd.f32 0.0, %v1890
        %v1892 = vpop.f32.mrf.mxu0
        %v1893 = vadd.f32 0.0, %v1892
        %1894 = vdwg.mxu0
        %v1895 = vrcp.pop %v1783
        %v1896 = vrcp.pop %v1785
        %v1897 = vrcp.pop %v1787
        %v1898 = vrcp.pop %v1789
        %v1899 = vrcp.pop %v1791
        %v1900 = vrcp.pop %v1793
        %v1901 = vrcp.pop %v1795
        %v1902 = vrcp.pop %v1797
        %v1903 = vrcp.pop %v1799
        %v1904 = vrcp.pop %v1801
        %v1905 = vrcp.pop %v1803
        %v1906 = vrcp.pop %v1805
        %v1907 = vrcp.pop %v1807
        %v1908 = vrcp.pop %v1809
        %v1909 = vrcp.pop %v1811
        %v1910 = vrcp.pop %v1813
        %v1911 = vmul.f32 %v1856, %v1895
        %v1912 = vmul.f32 %v1858, %v1896
        %v1913 = vmul.f32 %v1861, %v1897
        %v1914 = vmul.f32 %v1863, %v1898
        %v1915 = vmul.f32 %v1866, %v1899
        %v1916 = vmul.f32 %v1868, %v1900
        %v1917 = vmul.f32 %v1871, %v1901
        %v1918 = vmul.f32 %v1873, %v1902
        %v1919 = vmul.f32 %v1876, %v1903
        %v1920 = vmul.f32 %v1878, %v1904
        %v1921 = vmul.f32 %v1881, %v1905
        %v1922 = vmul.f32 %v1883, %v1906
        %v1923 = vmul.f32 %v1886, %v1907
        %v1924 = vmul.f32 %v1888, %v1908
        %v1925 = vmul.f32 %v1891, %v1909
        %v1926 = vmul.f32 %v1893, %v1910
        %v1927 = vpack.c.bf16 %v1911, %v1911
        %v1928 = vpack.c.bf16 %v1912, %v1912
        %v1929 = vpack.c.bf16 %v1913, %v1913
        %v1930 = vpack.c.bf16 %v1914, %v1914
        %v1931 = vpack.c.bf16 %v1915, %v1915
        %v1932 = vpack.c.bf16 %v1916, %v1916
        %v1933 = vpack.c.bf16 %v1917, %v1917
        %v1934 = vpack.c.bf16 %v1918, %v1918
        %v1935 = vpack.c.bf16 %v1919, %v1919
        %v1936 = vpack.c.bf16 %v1920, %v1920
        %v1937 = vpack.c.bf16 %v1921, %v1921
        %v1938 = vpack.c.bf16 %v1922, %v1922
        %v1939 = vpack.c.bf16 %v1923, %v1923
        %v1940 = vpack.c.bf16 %v1924, %v1924
        %v1941 = vpack.c.bf16 %v1925, %v1925
        %v1942 = vpack.c.bf16 %v1926, %v1926
        %1959 = vrot.lane.b32.xlu0 %v1927, 64
        %v1960 = vpop.permute.xlu0 %1959
        %1961 = vrot.lane.b32.xlu0 %v1928, 64
        %v1962 = vpop.permute.xlu0 %1961
        %1963 = vrot.lane.b32.xlu0 %v1929, 64
        %v1964 = vpop.permute.xlu0 %1963
        %1965 = vrot.lane.b32.xlu0 %v1930, 64
        %v1966 = vpop.permute.xlu0 %1965
        %1967 = vrot.lane.b32.xlu0 %v1931, 64
        %v1968 = vpop.permute.xlu0 %1967
        %1969 = vrot.lane.b32.xlu0 %v1932, 64
        %v1970 = vpop.permute.xlu0 %1969
        %1971 = vrot.lane.b32.xlu0 %v1933, 64
        %v1972 = vpop.permute.xlu0 %1971
        %1973 = vrot.lane.b32.xlu0 %v1934, 64
        %v1974 = vpop.permute.xlu0 %1973
        %1975 = vrot.lane.b32.xlu0 %v1935, 64
        %v1976 = vpop.permute.xlu0 %1975
        %1977 = vrot.lane.b32.xlu0 %v1936, 64
        %v1978 = vpop.permute.xlu0 %1977
        %1979 = vrot.lane.b32.xlu0 %v1937, 64
        %v1980 = vpop.permute.xlu0 %1979
        %1981 = vrot.lane.b32.xlu0 %v1938, 64
        %v1982 = vpop.permute.xlu0 %1981
        %1983 = vrot.lane.b32.xlu0 %v1939, 64
        %v1984 = vpop.permute.xlu0 %1983
        %1985 = vrot.lane.b32.xlu0 %v1940, 64
        %v1986 = vpop.permute.xlu0 %1985
        %1987 = vrot.lane.b32.xlu0 %v1941, 64
        %v1988 = vpop.permute.xlu0 %1987
        %1989 = vrot.lane.b32.xlu0 %v1942, 64
        %v1990 = vpop.permute.xlu0 %1989
        %vm2007 = vcmask 781824
        %2008 = vst.msk [vmem:[#allocation2] sm:$0xf] %vm2007, %v1960
        %2009 = vst.msk [vmem:[#allocation2 + $0x4] sm:$0xf] %vm2007, %v1962
        %2010 = vst.msk [vmem:[#allocation2 + $0x8] sm:$0xf] %vm2007, %v1964
        %2011 = vst.msk [vmem:[#allocation2 + $0xc] sm:$0xf] %vm2007, %v1966
        %2012 = vst.msk [vmem:[#allocation2 + $0x10] sm:$0xf] %vm2007, %v1968
        %2013 = vst.msk [vmem:[#allocation2 + $0x14] sm:$0xf] %vm2007, %v1970
        %2014 = vst.msk [vmem:[#allocation2 + $0x18] sm:$0xf] %vm2007, %v1972
        %2015 = vst.msk [vmem:[#allocation2 + $0x1c] sm:$0xf] %vm2007, %v1974
        %2016 = vst.msk [vmem:[#allocation2 + $0x20] sm:$0xf] %vm2007, %v1976
        %2017 = vst.msk [vmem:[#allocation2 + $0x24] sm:$0xf] %vm2007, %v1978
        %2018 = vst.msk [vmem:[#allocation2 + $0x28] sm:$0xf] %vm2007, %v1980
        %2019 = vst.msk [vmem:[#allocation2 + $0x2c] sm:$0xf] %vm2007, %v1982
        %2020 = vst.msk [vmem:[#allocation2 + $0x30] sm:$0xf] %vm2007, %v1984
        %2021 = vst.msk [vmem:[#allocation2 + $0x34] sm:$0xf] %vm2007, %v1986
        %2022 = vst.msk [vmem:[#allocation2 + $0x38] sm:$0xf] %vm2007, %v1988
        %2023 = vst.msk [vmem:[#allocation2 + $0x3c] sm:$0xf] %vm2007, %v1990
        %2024 = vrot.lane.b32.xlu0 %v710, 32
        %v2025 = vpop.permute.xlu0 %2024
        %2026 = vrot.lane.b32.xlu0 %v711, 32
        %v2027 = vpop.permute.xlu0 %2026
        %2028 = vrot.lane.b32.xlu0 %v712, 32
        %v2029 = vpop.permute.xlu0 %2028
        %2030 = vrot.lane.b32.xlu0 %v713, 32
        %v2031 = vpop.permute.xlu0 %2030
        %2032 = vrot.lane.b32.xlu0 %v714, 32
        %v2033 = vpop.permute.xlu0 %2032
        %2034 = vrot.lane.b32.xlu0 %v715, 32
        %v2035 = vpop.permute.xlu0 %2034
        %2036 = vrot.lane.b32.xlu0 %v716, 32
        %v2037 = vpop.permute.xlu0 %2036
        %2038 = vrot.lane.b32.xlu0 %v717, 32
        %v2039 = vpop.permute.xlu0 %2038
        %2040 = vrot.lane.b32.xlu0 %v734, 32
        %v2041 = vpop.permute.xlu0 %2040
        %2042 = vrot.lane.b32.xlu0 %v735, 32
        %v2043 = vpop.permute.xlu0 %2042
        %2044 = vrot.lane.b32.xlu0 %v736, 32
        %v2045 = vpop.permute.xlu0 %2044
        %2046 = vrot.lane.b32.xlu0 %v737, 32
        %v2047 = vpop.permute.xlu0 %2046
        %2048 = vrot.lane.b32.xlu0 %v738, 32
        %v2049 = vpop.permute.xlu0 %2048
        %2050 = vrot.lane.b32.xlu0 %v739, 32
        %v2051 = vpop.permute.xlu0 %2050
        %2052 = vrot.lane.b32.xlu0 %v740, 32
        %v2053 = vpop.permute.xlu0 %2052
        %2054 = vrot.lane.b32.xlu0 %v741, 32
        %v2055 = vpop.permute.xlu0 %2054
        %v2057 = vsel %vm742, %v2025, 0
        %v2060 = vsel %vm742, %v2027, 0
        %v2063 = vsel %vm742, %v2029, 0
        %v2066 = vsel %vm742, %v2031, 0
        %v2069 = vsel %vm742, %v2033, 0
        %v2072 = vsel %vm742, %v2035, 0
        %v2075 = vsel %vm742, %v2037, 0
        %v2078 = vsel %vm742, %v2039, 0
        %v2081 = vsel %vm742, %v2041, 0
        %v2084 = vsel %vm742, %v2043, 0
        %v2087 = vsel %vm742, %v2045, 0
        %v2090 = vsel %vm742, %v2047, 0
        %v2093 = vsel %vm742, %v2049, 0
        %v2096 = vsel %vm742, %v2051, 0
        %v2099 = vsel %vm742, %v2053, 0
        %v2102 = vsel %vm742, %v2055, 0
        %2104 = vmatpush.bf16.xpose.msra.mxu0 %v2102
        %2105 = vmatpush.bf16.xpose.msra.mxu0 %v2099
        %2106 = vmatpush.bf16.xpose.msra.mxu0 %v2096
        %2107 = vmatpush.bf16.xpose.msra.mxu0 %v2093
        %2108 = vmatpush.bf16.xpose.msra.mxu0 %v2090
        %2109 = vmatpush.bf16.xpose.msra.mxu0 %v2087
        %2110 = vmatpush.bf16.xpose.msra.mxu0 %v2084
        %2111 = vmatpush.bf16.xpose.msra.mxu0 %v2081
        %2112 = vmatmul.bf16.gmra.mxu0 %v2057
        %v2113 = vpop.f32.mrf.mxu0
        %v2114 = vadd.f32 0.0, %v2113
        %v2115 = vpop.f32.mrf.mxu0
        %v2116 = vadd.f32 0.0, %v2115
        %2117 = vmatmul.bf16.gmra.mxu0 %v2060
        %v2118 = vpop.f32.mrf.mxu0
        %v2119 = vadd.f32 0.0, %v2118
        %v2120 = vpop.f32.mrf.mxu0
        %v2121 = vadd.f32 0.0, %v2120
        %2122 = vmatmul.bf16.gmra.mxu0 %v2063
        %v2123 = vpop.f32.mrf.mxu0
        %v2124 = vadd.f32 0.0, %v2123
        %v2125 = vpop.f32.mrf.mxu0
        %v2126 = vadd.f32 0.0, %v2125
        %2127 = vmatmul.bf16.gmra.mxu0 %v2066
        %v2128 = vpop.f32.mrf.mxu0
        %v2129 = vadd.f32 0.0, %v2128
        %v2130 = vpop.f32.mrf.mxu0
        %v2131 = vadd.f32 0.0, %v2130
        %2132 = vmatmul.bf16.gmra.mxu0 %v2069
        %v2133 = vpop.f32.mrf.mxu0
        %v2134 = vadd.f32 0.0, %v2133
        %v2135 = vpop.f32.mrf.mxu0
        %v2136 = vadd.f32 0.0, %v2135
        %2137 = vmatmul.bf16.gmra.mxu0 %v2072
        %v2138 = vpop.f32.mrf.mxu0
        %v2139 = vadd.f32 0.0, %v2138
        %v2140 = vpop.f32.mrf.mxu0
        %v2141 = vadd.f32 0.0, %v2140
        %2142 = vmatmul.bf16.gmra.mxu0 %v2075
        %v2143 = vpop.f32.mrf.mxu0
        %v2144 = vadd.f32 0.0, %v2143
        %v2145 = vpop.f32.mrf.mxu0
        %v2146 = vadd.f32 0.0, %v2145
        %2147 = vmatmul.bf16.gmra.mxu0 %v2078
        %v2148 = vpop.f32.mrf.mxu0
        %v2149 = vadd.f32 0.0, %v2148
        %v2150 = vpop.f32.mrf.mxu0
        %v2151 = vadd.f32 0.0, %v2150
        %2152 = vdwg.mxu0
        %2153 = vmax.xlane.f32.xlu0 %v2114
        %v2154 = vpop.xlane.xlu0 %2153
        %2155 = vmax.xlane.f32.xlu0 %v2116
        %v2156 = vpop.xlane.xlu0 %2155
        %2157 = vmax.xlane.f32.xlu0 %v2119
        %v2158 = vpop.xlane.xlu0 %2157
        %2159 = vmax.xlane.f32.xlu0 %v2121
        %v2160 = vpop.xlane.xlu0 %2159
        %2161 = vmax.xlane.f32.xlu0 %v2124
        %v2162 = vpop.xlane.xlu0 %2161
        %2163 = vmax.xlane.f32.xlu0 %v2126
        %v2164 = vpop.xlane.xlu0 %2163
        %2165 = vmax.xlane.f32.xlu0 %v2129
        %v2166 = vpop.xlane.xlu0 %2165
        %2167 = vmax.xlane.f32.xlu0 %v2131
        %v2168 = vpop.xlane.xlu0 %2167
        %2169 = vmax.xlane.f32.xlu0 %v2134
        %v2170 = vpop.xlane.xlu0 %2169
        %2171 = vmax.xlane.f32.xlu0 %v2136
        %v2172 = vpop.xlane.xlu0 %2171
        %2173 = vmax.xlane.f32.xlu0 %v2139
        %v2174 = vpop.xlane.xlu0 %2173
        %2175 = vmax.xlane.f32.xlu0 %v2141
        %v2176 = vpop.xlane.xlu0 %2175
        %2177 = vmax.xlane.f32.xlu0 %v2144
        %v2178 = vpop.xlane.xlu0 %2177
        %2179 = vmax.xlane.f32.xlu0 %v2146
        %v2180 = vpop.xlane.xlu0 %2179
        %2181 = vmax.xlane.f32.xlu0 %v2149
        %v2182 = vpop.xlane.xlu0 %2181
        %2183 = vmax.xlane.f32.xlu0 %v2151
        %v2184 = vpop.xlane.xlu0 %2183
        %v2185 = vsub.f32 %v2114, %v2154
        %v2186 = vsub.f32 %v2116, %v2156
        %v2187 = vsub.f32 %v2119, %v2158
        %v2188 = vsub.f32 %v2121, %v2160
        %v2189 = vsub.f32 %v2124, %v2162
        %v2190 = vsub.f32 %v2126, %v2164
        %v2191 = vsub.f32 %v2129, %v2166
        %v2192 = vsub.f32 %v2131, %v2168
        %v2193 = vsub.f32 %v2134, %v2170
        %v2194 = vsub.f32 %v2136, %v2172
        %v2195 = vsub.f32 %v2139, %v2174
        %v2196 = vsub.f32 %v2141, %v2176
        %v2197 = vsub.f32 %v2144, %v2178
        %v2198 = vsub.f32 %v2146, %v2180
        %v2199 = vsub.f32 %v2149, %v2182
        %v2200 = vsub.f32 %v2151, %v2184
        %v2201 = vmul.f32 %v2185, 1.442695
        %v2202 = vpow.pop %v2201
        %v2203 = vmul.f32 %v2186, 1.442695
        %v2204 = vpow.pop %v2203
        %v2205 = vmul.f32 %v2187, 1.442695
        %v2206 = vpow.pop %v2205
        %v2207 = vmul.f32 %v2188, 1.442695
        %v2208 = vpow.pop %v2207
        %v2209 = vmul.f32 %v2189, 1.442695
        %v2210 = vpow.pop %v2209
        %v2211 = vmul.f32 %v2190, 1.442695
        %v2212 = vpow.pop %v2211
        %v2213 = vmul.f32 %v2191, 1.442695
        %v2214 = vpow.pop %v2213
        %v2215 = vmul.f32 %v2192, 1.442695
        %v2216 = vpow.pop %v2215
        %v2217 = vmul.f32 %v2193, 1.442695
        %v2218 = vpow.pop %v2217
        %v2219 = vmul.f32 %v2194, 1.442695
        %v2220 = vpow.pop %v2219
        %v2221 = vmul.f32 %v2195, 1.442695
        %v2222 = vpow.pop %v2221
        %v2223 = vmul.f32 %v2196, 1.442695
        %v2224 = vpow.pop %v2223
        %v2225 = vmul.f32 %v2197, 1.442695
        %v2226 = vpow.pop %v2225
        %v2227 = vmul.f32 %v2198, 1.442695
        %v2228 = vpow.pop %v2227
        %v2229 = vmul.f32 %v2199, 1.442695
        %v2230 = vpow.pop %v2229
        %v2231 = vmul.f32 %v2200, 1.442695
        %v2232 = vpow.pop %v2231
        %2233 = vadd.xlane.f32.xlu0 %v2202
        %v2234 = vpop.xlane.xlu0 %2233
        %2235 = vadd.xlane.f32.xlu0 %v2204
        %v2236 = vpop.xlane.xlu0 %2235
        %2237 = vadd.xlane.f32.xlu0 %v2206
        %v2238 = vpop.xlane.xlu0 %2237
        %2239 = vadd.xlane.f32.xlu0 %v2208
        %v2240 = vpop.xlane.xlu0 %2239
        %2241 = vadd.xlane.f32.xlu0 %v2210
        %v2242 = vpop.xlane.xlu0 %2241
        %2243 = vadd.xlane.f32.xlu0 %v2212
        %v2244 = vpop.xlane.xlu0 %2243
        %2245 = vadd.xlane.f32.xlu0 %v2214
        %v2246 = vpop.xlane.xlu0 %2245
        %2247 = vadd.xlane.f32.xlu0 %v2216
        %v2248 = vpop.xlane.xlu0 %2247
        %2249 = vadd.xlane.f32.xlu0 %v2218
        %v2250 = vpop.xlane.xlu0 %2249
        %2251 = vadd.xlane.f32.xlu0 %v2220
        %v2252 = vpop.xlane.xlu0 %2251
        %2253 = vadd.xlane.f32.xlu0 %v2222
        %v2254 = vpop.xlane.xlu0 %2253
        %2255 = vadd.xlane.f32.xlu0 %v2224
        %v2256 = vpop.xlane.xlu0 %2255
        %2257 = vadd.xlane.f32.xlu0 %v2226
        %v2258 = vpop.xlane.xlu0 %2257
        %2259 = vadd.xlane.f32.xlu0 %v2228
        %v2260 = vpop.xlane.xlu0 %2259
        %2261 = vadd.xlane.f32.xlu0 %v2230
        %v2262 = vpop.xlane.xlu0 %2261
        %2263 = vadd.xlane.f32.xlu0 %v2232
        %v2264 = vpop.xlane.xlu0 %2263
        %v2265 = vpack.c.bf16 %v2204, %v2202
        %v2266 = vpack.c.bf16 %v2208, %v2206
        %v2267 = vpack.c.bf16 %v2212, %v2210
        %v2268 = vpack.c.bf16 %v2216, %v2214
        %v2269 = vpack.c.bf16 %v2220, %v2218
        %v2270 = vpack.c.bf16 %v2224, %v2222
        %v2271 = vpack.c.bf16 %v2228, %v2226
        %v2272 = vpack.c.bf16 %v2232, %v2230
        %2273 = vrot.lane.b32.xlu0 %v992, 32
        %v2274 = vpop.permute.xlu0 %2273
        %2275 = vrot.lane.b32.xlu0 %v993, 32
        %v2276 = vpop.permute.xlu0 %2275
        %2277 = vrot.lane.b32.xlu0 %v994, 32
        %v2278 = vpop.permute.xlu0 %2277
        %2279 = vrot.lane.b32.xlu0 %v995, 32
        %v2280 = vpop.permute.xlu0 %2279
        %2281 = vrot.lane.b32.xlu0 %v996, 32
        %v2282 = vpop.permute.xlu0 %2281
        %2283 = vrot.lane.b32.xlu0 %v997, 32
        %v2284 = vpop.permute.xlu0 %2283
        %2285 = vrot.lane.b32.xlu0 %v998, 32
        %v2286 = vpop.permute.xlu0 %2285
        %2287 = vrot.lane.b32.xlu0 %v999, 32
        %v2288 = vpop.permute.xlu0 %2287
        %2297 = vmatpush.bf16.msra.mxu0 %v2288
        %2298 = vmatpush.bf16.msra.mxu0 %v2286
        %2299 = vmatpush.bf16.msra.mxu0 %v2284
        %2300 = vmatpush.bf16.msra.mxu0 %v2282
        %2301 = vmatpush.bf16.msra.mxu0 %v2280
        %2302 = vmatpush.bf16.msra.mxu0 %v2278
        %2303 = vmatpush.bf16.msra.mxu0 %v2276
        %2304 = vmatpush.bf16.msra.mxu0 %v2274
        %2305 = vmatmul.bf16.gmra.mxu0 %v2265
        %v2306 = vpop.f32.mrf.mxu0
        %v2307 = vadd.f32 0.0, %v2306
        %v2308 = vpop.f32.mrf.mxu0
        %v2309 = vadd.f32 0.0, %v2308
        %2310 = vmatmul.bf16.gmra.mxu0 %v2266
        %v2311 = vpop.f32.mrf.mxu0
        %v2312 = vadd.f32 0.0, %v2311
        %v2313 = vpop.f32.mrf.mxu0
        %v2314 = vadd.f32 0.0, %v2313
        %2315 = vmatmul.bf16.gmra.mxu0 %v2267
        %v2316 = vpop.f32.mrf.mxu0
        %v2317 = vadd.f32 0.0, %v2316
        %v2318 = vpop.f32.mrf.mxu0
        %v2319 = vadd.f32 0.0, %v2318
        %2320 = vmatmul.bf16.gmra.mxu0 %v2268
        %v2321 = vpop.f32.mrf.mxu0
        %v2322 = vadd.f32 0.0, %v2321
        %v2323 = vpop.f32.mrf.mxu0
        %v2324 = vadd.f32 0.0, %v2323
        %2325 = vmatmul.bf16.gmra.mxu0 %v2269
        %v2326 = vpop.f32.mrf.mxu0
        %v2327 = vadd.f32 0.0, %v2326
        %v2328 = vpop.f32.mrf.mxu0
        %v2329 = vadd.f32 0.0, %v2328
        %2330 = vmatmul.bf16.gmra.mxu0 %v2270
        %v2331 = vpop.f32.mrf.mxu0
        %v2332 = vadd.f32 0.0, %v2331
        %v2333 = vpop.f32.mrf.mxu0
        %v2334 = vadd.f32 0.0, %v2333
        %2335 = vmatmul.bf16.gmra.mxu0 %v2271
        %v2336 = vpop.f32.mrf.mxu0
        %v2337 = vadd.f32 0.0, %v2336
        %v2338 = vpop.f32.mrf.mxu0
        %v2339 = vadd.f32 0.0, %v2338
        %2340 = vmatmul.bf16.gmra.mxu0 %v2272
        %v2341 = vpop.f32.mrf.mxu0
        %v2342 = vadd.f32 0.0, %v2341
        %v2343 = vpop.f32.mrf.mxu0
        %v2344 = vadd.f32 0.0, %v2343
        %2345 = vdwg.mxu0
        %v2346 = vrcp.pop %v2234
        %v2347 = vrcp.pop %v2236
        %v2348 = vrcp.pop %v2238
        %v2349 = vrcp.pop %v2240
        %v2350 = vrcp.pop %v2242
        %v2351 = vrcp.pop %v2244
        %v2352 = vrcp.pop %v2246
        %v2353 = vrcp.pop %v2248
        %v2354 = vrcp.pop %v2250
        %v2355 = vrcp.pop %v2252
        %v2356 = vrcp.pop %v2254
        %v2357 = vrcp.pop %v2256
        %v2358 = vrcp.pop %v2258
        %v2359 = vrcp.pop %v2260
        %v2360 = vrcp.pop %v2262
        %v2361 = vrcp.pop %v2264
        %v2362 = vmul.f32 %v2307, %v2346
        %v2363 = vmul.f32 %v2309, %v2347
        %v2364 = vmul.f32 %v2312, %v2348
        %v2365 = vmul.f32 %v2314, %v2349
        %v2366 = vmul.f32 %v2317, %v2350
        %v2367 = vmul.f32 %v2319, %v2351
        %v2368 = vmul.f32 %v2322, %v2352
        %v2369 = vmul.f32 %v2324, %v2353
        %v2370 = vmul.f32 %v2327, %v2354
        %v2371 = vmul.f32 %v2329, %v2355
        %v2372 = vmul.f32 %v2332, %v2356
        %v2373 = vmul.f32 %v2334, %v2357
        %v2374 = vmul.f32 %v2337, %v2358
        %v2375 = vmul.f32 %v2339, %v2359
        %v2376 = vmul.f32 %v2342, %v2360
        %v2377 = vmul.f32 %v2344, %v2361
        %v2378 = vpack.c.bf16 %v2362, %v2362
        %v2379 = vpack.c.bf16 %v2363, %v2363
        %v2380 = vpack.c.bf16 %v2364, %v2364
        %v2381 = vpack.c.bf16 %v2365, %v2365
        %v2382 = vpack.c.bf16 %v2366, %v2366
        %v2383 = vpack.c.bf16 %v2367, %v2367
        %v2384 = vpack.c.bf16 %v2368, %v2368
        %v2385 = vpack.c.bf16 %v2369, %v2369
        %v2386 = vpack.c.bf16 %v2370, %v2370
        %v2387 = vpack.c.bf16 %v2371, %v2371
        %v2388 = vpack.c.bf16 %v2372, %v2372
        %v2389 = vpack.c.bf16 %v2373, %v2373
        %v2390 = vpack.c.bf16 %v2374, %v2374
        %v2391 = vpack.c.bf16 %v2375, %v2375
        %v2392 = vpack.c.bf16 %v2376, %v2376
        %v2393 = vpack.c.bf16 %v2377, %v2377
        %2410 = vrot.lane.b32.xlu0 %v2378, 96
        %v2411 = vpop.permute.xlu0 %2410
        %2412 = vrot.lane.b32.xlu0 %v2379, 96
        %v2413 = vpop.permute.xlu0 %2412
        %2414 = vrot.lane.b32.xlu0 %v2380, 96
        %v2415 = vpop.permute.xlu0 %2414
        %2416 = vrot.lane.b32.xlu0 %v2381, 96
        %v2417 = vpop.permute.xlu0 %2416
        %2418 = vrot.lane.b32.xlu0 %v2382, 96
        %v2419 = vpop.permute.xlu0 %2418
        %2420 = vrot.lane.b32.xlu0 %v2383, 96
        %v2421 = vpop.permute.xlu0 %2420
        %2422 = vrot.lane.b32.xlu0 %v2384, 96
        %v2423 = vpop.permute.xlu0 %2422
        %2424 = vrot.lane.b32.xlu0 %v2385, 96
        %v2425 = vpop.permute.xlu0 %2424
        %2426 = vrot.lane.b32.xlu0 %v2386, 96
        %v2427 = vpop.permute.xlu0 %2426
        %2428 = vrot.lane.b32.xlu0 %v2387, 96
        %v2429 = vpop.permute.xlu0 %2428
        %2430 = vrot.lane.b32.xlu0 %v2388, 96
        %v2431 = vpop.permute.xlu0 %2430
        %2432 = vrot.lane.b32.xlu0 %v2389, 96
        %v2433 = vpop.permute.xlu0 %2432
        %2434 = vrot.lane.b32.xlu0 %v2390, 96
        %v2435 = vpop.permute.xlu0 %2434
        %2436 = vrot.lane.b32.xlu0 %v2391, 96
        %v2437 = vpop.permute.xlu0 %2436
        %2438 = vrot.lane.b32.xlu0 %v2392, 96
        %v2439 = vpop.permute.xlu0 %2438
        %2440 = vrot.lane.b32.xlu0 %v2393, 96
        %v2441 = vpop.permute.xlu0 %2440
        %vm2458 = vcmask 1044224
        %2459 = vst.msk [vmem:[#allocation2] sm:$0xf] %vm2458, %v2411
        %2460 = vst.msk [vmem:[#allocation2 + $0x4] sm:$0xf] %vm2458, %v2413
        %2461 = vst.msk [vmem:[#allocation2 + $0x8] sm:$0xf] %vm2458, %v2415
        %2462 = vst.msk [vmem:[#allocation2 + $0xc] sm:$0xf] %vm2458, %v2417
        %2463 = vst.msk [vmem:[#allocation2 + $0x10] sm:$0xf] %vm2458, %v2419
        %2464 = vst.msk [vmem:[#allocation2 + $0x14] sm:$0xf] %vm2458, %v2421
        %2465 = vst.msk [vmem:[#allocation2 + $0x18] sm:$0xf] %vm2458, %v2423
        %2466 = vst.msk [vmem:[#allocation2 + $0x1c] sm:$0xf] %vm2458, %v2425
        %2467 = vst.msk [vmem:[#allocation2 + $0x20] sm:$0xf] %vm2458, %v2427
        %2468 = vst.msk [vmem:[#allocation2 + $0x24] sm:$0xf] %vm2458, %v2429
        %2469 = vst.msk [vmem:[#allocation2 + $0x28] sm:$0xf] %vm2458, %v2431
        %2470 = vst.msk [vmem:[#allocation2 + $0x2c] sm:$0xf] %vm2458, %v2433
        %2471 = vst.msk [vmem:[#allocation2 + $0x30] sm:$0xf] %vm2458, %v2435
        %2472 = vst.msk [vmem:[#allocation2 + $0x34] sm:$0xf] %vm2458, %v2437
        %2473 = vst.msk [vmem:[#allocation2 + $0x38] sm:$0xf] %vm2458, %v2439
        %2474 = vst.msk [vmem:[#allocation2 + $0x3c] sm:$0xf] %vm2458, %v2441
        %v2475 = vld [vmem:[#allocation2] sm:$0xf]
        %v2476 = vld [vmem:[#allocation2 + $0x4] sm:$0xf]
        %v2477 = vld [vmem:[#allocation2 + $0x8] sm:$0xf]
        %v2478 = vld [vmem:[#allocation2 + $0xc] sm:$0xf]
        %v2479 = vld [vmem:[#allocation2 + $0x10] sm:$0xf]
        %v2480 = vld [vmem:[#allocation2 + $0x14] sm:$0xf]
        %v2481 = vld [vmem:[#allocation2 + $0x18] sm:$0xf]
        %v2482 = vld [vmem:[#allocation2 + $0x1c] sm:$0xf]
        %v2483 = vld [vmem:[#allocation2 + $0x20] sm:$0xf]
        %v2484 = vld [vmem:[#allocation2 + $0x24] sm:$0xf]
        %v2485 = vld [vmem:[#allocation2 + $0x28] sm:$0xf]
        %v2486 = vld [vmem:[#allocation2 + $0x2c] sm:$0xf]
        %v2487 = vld [vmem:[#allocation2 + $0x30] sm:$0xf]
        %v2488 = vld [vmem:[#allocation2 + $0x34] sm:$0xf]
        %v2489 = vld [vmem:[#allocation2 + $0x38] sm:$0xf]
        %v2490 = vld [vmem:[#allocation2 + $0x3c] sm:$0xf]
        %v2491 = vld [vmem:[#allocation9] sm:$0xf]
        %v2492 = vld [vmem:[#allocation9 + $0x4] sm:$0xf]
        %v2493 = vld [vmem:[#allocation9 + $0x8] sm:$0xf]
        %v2494 = vld [vmem:[#allocation9 + $0xc] sm:$0xf]
        %v2495 = vld [vmem:[#allocation9 + $0x10] sm:$0xf]
        %v2496 = vld [vmem:[#allocation9 + $0x14] sm:$0xf]
        %v2497 = vld [vmem:[#allocation9 + $0x18] sm:$0xf]
        %v2498 = vld [vmem:[#allocation9 + $0x1c] sm:$0xf]
        %v2499 = vld [vmem:[#allocation9 + $0x20] sm:$0xf]
        %v2500 = vld [vmem:[#allocation9 + $0x24] sm:$0xf]
        %v2501 = vld [vmem:[#allocation9 + $0x28] sm:$0xf]
        %v2502 = vld [vmem:[#allocation9 + $0x2c] sm:$0xf]
        %v2503 = vld [vmem:[#allocation9 + $0x30] sm:$0xf]
        %v2504 = vld [vmem:[#allocation9 + $0x34] sm:$0xf]
        %v2505 = vld [vmem:[#allocation9 + $0x38] sm:$0xf]
        %v2506 = vld [vmem:[#allocation9 + $0x3c] sm:$0xf]
        %v2507 = vld [vmem:[#allocation11] sm:$0x1]
        %v2509 = vperm.slane %v2507, 0
        %v2527 = vunpack.c.l.b16 %v2475
        %v2528 = vunpack.c.l.b16 %v2476
        %v2529 = vunpack.c.l.b16 %v2477
        %v2530 = vunpack.c.l.b16 %v2478
        %v2531 = vunpack.c.l.b16 %v2479
        %v2532 = vunpack.c.l.b16 %v2480
        %v2533 = vunpack.c.l.b16 %v2481
        %v2534 = vunpack.c.l.b16 %v2482
        %v2535 = vunpack.c.l.b16 %v2483
        %v2536 = vunpack.c.l.b16 %v2484
        %v2537 = vunpack.c.l.b16 %v2485
        %v2538 = vunpack.c.l.b16 %v2486
        %v2539 = vunpack.c.l.b16 %v2487
        %v2540 = vunpack.c.l.b16 %v2488
        %v2541 = vunpack.c.l.b16 %v2489
        %v2542 = vunpack.c.l.b16 %v2490
        %v2543 = vpack.c.b16 %v2528, %v2527
        %v2544 = vpack.c.b16 %v2530, %v2529
        %v2545 = vpack.c.b16 %v2532, %v2531
        %v2546 = vpack.c.b16 %v2534, %v2533
        %v2547 = vpack.c.b16 %v2536, %v2535
        %v2548 = vpack.c.b16 %v2538, %v2537
        %v2549 = vpack.c.b16 %v2540, %v2539
        %v2550 = vpack.c.b16 %v2542, %v2541
        %v2575 = vunpack.c.l.b16 %v2491
        %v2576 = vunpack.c.l.b16 %v2492
        %v2577 = vunpack.c.l.b16 %v2493
        %v2578 = vunpack.c.l.b16 %v2494
        %v2579 = vunpack.c.l.b16 %v2495
        %v2580 = vunpack.c.l.b16 %v2496
        %v2581 = vunpack.c.l.b16 %v2497
        %v2582 = vunpack.c.l.b16 %v2498
        %v2583 = vunpack.c.l.b16 %v2499
        %v2584 = vunpack.c.l.b16 %v2500
        %v2585 = vunpack.c.l.b16 %v2501
        %v2586 = vunpack.c.l.b16 %v2502
        %v2587 = vunpack.c.l.b16 %v2503
        %v2588 = vunpack.c.l.b16 %v2504
        %v2589 = vunpack.c.l.b16 %v2505
        %v2590 = vunpack.c.l.b16 %v2506
        %v2591 = vpack.c.b16 %v2576, %v2575
        %v2592 = vpack.c.b16 %v2578, %v2577
        %v2593 = vpack.c.b16 %v2580, %v2579
        %v2594 = vpack.c.b16 %v2582, %v2581
        %v2595 = vpack.c.b16 %v2584, %v2583
        %v2596 = vpack.c.b16 %v2586, %v2585
        %v2597 = vpack.c.b16 %v2588, %v2587
        %v2598 = vpack.c.b16 %v2590, %v2589
        %2607 = vmatpush.bf16.msra.mxu0 %v2598
        %2608 = vmatpush.bf16.msra.mxu0 %v2597
        %2609 = vmatpush.bf16.msra.mxu0 %v2596
        %2610 = vmatpush.bf16.msra.mxu0 %v2595
        %2611 = vmatpush.bf16.msra.mxu0 %v2594
        %2612 = vmatpush.bf16.msra.mxu0 %v2593
        %2613 = vmatpush.bf16.msra.mxu0 %v2592
        %2614 = vmatpush.bf16.msra.mxu0 %v2591
        %2615 = vmatmul.bf16.gmra.mxu0 %v2543
        %v2616 = vpop.f32.mrf.mxu0
        %v2617 = vadd.f32 %v2509, %v2616
        %v2618 = vpop.f32.mrf.mxu0
        %v2619 = vadd.f32 %v2509, %v2618
        %2620 = vmatmul.bf16.gmra.mxu0 %v2544
        %v2621 = vpop.f32.mrf.mxu0
        %v2622 = vadd.f32 %v2509, %v2621
        %v2623 = vpop.f32.mrf.mxu0
        %v2624 = vadd.f32 %v2509, %v2623
        %2625 = vmatmul.bf16.gmra.mxu0 %v2545
        %v2626 = vpop.f32.mrf.mxu0
        %v2627 = vadd.f32 %v2509, %v2626
        %v2628 = vpop.f32.mrf.mxu0
        %v2629 = vadd.f32 %v2509, %v2628
        %2630 = vmatmul.bf16.gmra.mxu0 %v2546
        %v2631 = vpop.f32.mrf.mxu0
        %v2632 = vadd.f32 %v2509, %v2631
        %v2633 = vpop.f32.mrf.mxu0
        %v2634 = vadd.f32 %v2509, %v2633
        %2635 = vmatmul.bf16.gmra.mxu0 %v2547
        %v2636 = vpop.f32.mrf.mxu0
        %v2637 = vadd.f32 %v2509, %v2636
        %v2638 = vpop.f32.mrf.mxu0
        %v2639 = vadd.f32 %v2509, %v2638
        %2640 = vmatmul.bf16.gmra.mxu0 %v2548
        %v2641 = vpop.f32.mrf.mxu0
        %v2642 = vadd.f32 %v2509, %v2641
        %v2643 = vpop.f32.mrf.mxu0
        %v2644 = vadd.f32 %v2509, %v2643
        %2645 = vmatmul.bf16.gmra.mxu0 %v2549
        %v2646 = vpop.f32.mrf.mxu0
        %v2647 = vadd.f32 %v2509, %v2646
        %v2648 = vpop.f32.mrf.mxu0
        %v2649 = vadd.f32 %v2509, %v2648
        %2650 = vmatmul.bf16.gmra.mxu0 %v2550
        %v2651 = vpop.f32.mrf.mxu0
        %v2652 = vadd.f32 %v2509, %v2651
        %v2653 = vpop.f32.mrf.mxu0
        %v2654 = vadd.f32 %v2509, %v2653
        %2655 = vdwg.mxu0
        %2656 = vst [vmem:[%s306] sm:$0xff] %v2617
        %2657 = vst [vmem:[%s306 + $0x8] sm:$0xff] %v2619
        %2658 = vst [vmem:[%s306 + $0x10] sm:$0xff] %v2622
        %2659 = vst [vmem:[%s306 + $0x18] sm:$0xff] %v2624
        %2660 = vst [vmem:[%s306 + $0x20] sm:$0xff] %v2627
        %2661 = vst [vmem:[%s306 + $0x28] sm:$0xff] %v2629
        %2662 = vst [vmem:[%s306 + $0x30] sm:$0xff] %v2632
        %2663 = vst [vmem:[%s306 + $0x38] sm:$0xff] %v2634
        %2664 = vst [vmem:[%s306 + $0x40] sm:$0xff] %v2637
        %2665 = vst [vmem:[%s306 + $0x48] sm:$0xff] %v2639
        %2666 = vst [vmem:[%s306 + $0x50] sm:$0xff] %v2642
        %2667 = vst [vmem:[%s306 + $0x58] sm:$0xff] %v2644
        %2668 = vst [vmem:[%s306 + $0x60] sm:$0xff] %v2647
        %2669 = vst [vmem:[%s306 + $0x68] sm:$0xff] %v2649
        %2670 = vst [vmem:[%s306 + $0x70] sm:$0xff] %v2652
        %2671 = vst [vmem:[%s306 + $0x78] sm:$0xff] %v2654
        %s2672 = sand.u32 %s142, 1
        %s2673 = scalar_lea.sflag [#allocation5], %s2672
        %s2674 = sand.u32 %s142, 1
        %s2675 = smul.addr %s2674, 128
        %s2676 = scalar_lea.vmem [#allocation12], %s2675
        // Predicated region
        $region61: #{self_attention.1} parent=39 // pred_check
          %p2677 = pneg %p152
        $region62: #{self_attention.1} parent=39 // pred_check_branch
          %2679 = sbr.rel (%p2677) target = $region64
        $region63: #{self_attention.1} parent=39 // pred_region
          %2681 = vsyncadd %s2673, 0
          %s2682 = smul.addr %s24, 16
          %s2683 = smul.addr %s2682, 8
          %s2684 = scalar_lea.hbm %s5, %s2683
          %s2685 = sshll.u32 %s2676, 4
          %s2686 = int_to_ptr.vmem [resolvable:$true] %s2685
          %s2687 = sshll.u32 %s2684, 4
          %s2688 = int_to_ptr.hbm [resolvable:$true] %s2687
          %2693 = dma.vmem_to_hbm [thread:$0]  %s2686, 2048, %s2688, %s2673, 128, 128, 8
        $region64: #{self_attention.1} parent=39 // pred_fallthru
          _
      $region40: #{self_attention.1} parent=5 // pred_fallthru
        _
      %p2694 = scmp.le.s32.totalorder 2, %s19
      // Predicated region
      $region65: #{self_attention.1} parent=5 // pred_check
        %p2695 = pneg %p2694
      $region66: #{self_attention.1} parent=5 // pred_check_branch
        %2697 = sbr.rel (%p2695) target = $region68
      $region67: #{self_attention.1} parent=5 // pred_region
        %s2698 = ssub.s32 %s19, 2
        // Predicated region
        $region69: #{self_attention.1} parent=67 // pred_check
          %p2699 = pneg %p158
        $region70: #{self_attention.1} parent=67 // pred_check_branch
          %2701 = sbr.rel (%p2699) target = $region72
        $region71: #{self_attention.1} parent=67 // pred_region
          %s2702 = sand.u32 %s143, 1
          %s2703 = scalar_lea.sflag [#allocation5], %s2702
          %s2704 = sand.u32 %s143, 1
          %s2705 = smul.addr %s2704, 128
          %s2706 = scalar_lea.vmem [#allocation12], %s2705
          %2708 = dma.done %s2703, 2048
        $region72: #{self_attention.1} parent=67 // pred_fallthru
          _
      $region68: #{self_attention.1} parent=5 // pred_fallthru
        _
    $region6: #{self_attention.1} parent=1 // loop_footer
      %s23 = sadd.s32 1, %s19
    $region7: #{self_attention.1} parent=1 // loop_footer_branch
      %18 = sbr.rel target = $region3
    $region8: #{self_attention.1} parent=1 // loop_exit
      _
    %2709 = vsyncpa [#allocation4], 1
    %s2710 = scalar_lea.sflag [#allocation4], 1
    %2711 = vsyncpa %s2710, 1
    %2712 = vsyncpa [#allocation7], 1
    %2713 = vsyncpa [#allocation10], 1
    %2714 = vsyncpa [#allocation5], 1
    %s2715 = scalar_lea.sflag [#allocation5], 1
    %2716 = vsyncpa %s2715, 1

</llo_original>
